<compile_context>
chip_gen: v5e
topology: v5e:2x2
jax: 0.10.0
libtpu: 0.0.40
codegen_flags: <defaults>
</compile_context>

<pallas_src>
import numpy as np
import jax
import jax.numpy as jnp
from jax.experimental import pallas as pl
from jax.experimental.pallas import tpu as pltpu

C1, C2 = 64, 128      # conv out-channel counts (fixed by the module)
K1, K2 = 7, 3         # conv kernel sizes (fixed by the module)
FC1 = 256             # fc1 out_features (fixed by the module)
NPAD = 128            # lane-dense padded class dimension


def make_params(key, num_channels, slice_len, classes):
    """Deterministic synthetic parameters with PyTorch-native shapes."""
    L1 = slice_len - K1 + 1
    P1 = L1 // 2
    L2 = P1 - K2 + 1
    P2 = L2 // 2
    F = C2 * P2  # fc1 in_features (matches the torch shape-probe in __init__)

    ks = jax.random.split(key, 8)

    def init(k, shape, fan_in):
        return jax.random.normal(k, shape, jnp.float32) / np.sqrt(fan_in)

    return dict(
        w1=init(ks[0], (C1, num_channels, K1), num_channels * K1),
        b1=init(ks[1], (C1,), num_channels * K1),
        w2=init(ks[2], (C2, C1, K2), C1 * K2),
        b2=init(ks[3], (C2,), C1 * K2),
        wfc1=init(ks[4], (FC1, F), F),
        bfc1=init(ks[5], (FC1,), F),
        wfc2=init(ks[6], (classes, FC1), FC1),
        bfc2=init(ks[7], (classes,), FC1),
    )


def cnn1d_forward_pallas(x_ncl, params, *, tb=8):
    B, Cin, L0 = x_ncl.shape
    L1 = L0 - K1 + 1
    P1 = L1 // 2
    L2 = P1 - K2 + 1
    P2 = L2 // 2
    classes = params["wfc2"].shape[0]

    # The flattened stride-2 maxpool1 requires each sample to start at an even
    # global row, i.e. even L1 (choose an even slice_len).
    assert L1 % 2 == 0, "kernel requires even conv1 output length (even slice_len)"
    assert (tb * L1) % 8 == 0 and classes <= NPAD and P2 >= 1

    Bp = ((B + tb - 1) // tb) * tb          # batch padded to a multiple of tb
    R2 = tb * P1 - (K2 - 1)                 # rows of flattened conv2 output slab

    # ---------------- wrapper-side re-layout (plain JAX) ----------------
    x_blc = jnp.transpose(x_ncl, (0, 2, 1)).astype(jnp.float32)      # (B, L0, Cin)
    # im2col for conv1: patches[b, i, c*K1 + k] = x[b, c, i + k]
    patches = jnp.stack([x_blc[:, k:k + L1, :] for k in range(K1)], axis=-1)
    patches = patches.reshape(B, L1, Cin * K1)
    if Bp > B:
        patches = jnp.concatenate(
            [patches, jnp.zeros((Bp - B, L1, Cin * K1), patches.dtype)], axis=0)
    patches = patches.reshape(Bp * L1, Cin * K1).astype(jnp.bfloat16)

    w1f = params["w1"].reshape(C1, Cin * K1).T.astype(jnp.bfloat16)    # (Cin*K1, 64)
    w2t = jnp.transpose(params["w2"], (2, 1, 0)).astype(jnp.bfloat16)  # (K2, 64, 128)
    # torch.flatten(x, 1) is channel-major: flat[c*P2 + p]; fold that into a
    # (P2*C2, 256) row-permuted fc1 weight so the in-kernel lane-concat of the
    # per-position pooled blocks (order p-major, then channel) lines up.
    wf1p = jnp.transpose(params["wfc1"].reshape(FC1, C2, P2),
                         (2, 1, 0)).reshape(P2 * C2, FC1).astype(jnp.bfloat16)
    wf2p = jnp.zeros((FC1, NPAD), jnp.float32).at[:, :classes].set(
        params["wfc2"].T).astype(jnp.bfloat16)                         # (256, 128)
    b1 = params["b1"].reshape(1, C1).astype(jnp.float32)
    b2 = params["b2"].reshape(1, C2).astype(jnp.float32)
    bf1 = params["bfc1"].reshape(1, FC1).astype(jnp.float32)
    # padded classes get a huge negative bias -> exp() underflows to 0 and the
    # max() is untouched, so log_softmax over 128 lanes equals the real one.
    bf2p = jnp.full((1, NPAD), -1e30, jnp.float32).at[0, :classes].set(
        params["bfc2"])

    def kernel(x_ref, w1_ref, b1_ref, w2_ref, b2_ref,
               wf1_ref, bf1_ref, wf2_ref, bf2_ref,
               out_ref, h1_ref, h2_ref):
        # TODO(synk): normalize=True (nn.LayerNorm) path not implemented; the
        # module default is normalize=False, so forward() skips it.

        # conv1: one im2col matmul (M = tb*L1), bias, ReLU.
        acc1 = jnp.dot(x_ref[...], w1_ref[...],
                       preferred_element_type=jnp.float32)             # (tb*L1, 64)
        h1_ref[...] = jnp.maximum(acc1 + b1_ref[...], 0.0)

        # maxpool1 (k=2, s=2): L1 is even, so a global stride-2 pairing of the
        # flattened slab never crosses sample boundaries.
        p1 = jnp.maximum(h1_ref[pl.ds(0, tb * P1, stride=2), :],
                         h1_ref[pl.ds(1, tb * P1, stride=2), :]
                         ).astype(jnp.bfloat16)                         # (tb*P1, 64)

        # conv2 (valid, k=3) as K2 shifted matmuls over the flattened slab.
        # Rows whose local position >= L2 mix samples but are never read below.
        acc2 = jnp.dot(p1[0:R2, :], w2_ref[0],
                       preferred_element_type=jnp.float32)              # (R2, 128)
        for k in range(1, K2):
            acc2 = acc2 + jnp.dot(p1[k:k + R2, :], w2_ref[k],
                                  preferred_element_type=jnp.float32)
        h2_ref[...] = jnp.maximum(acc2 + b2_ref[...], 0.0)

        # maxpool2 fused with the channel-major flatten: for each pooled
        # position p gather the (tb, 128) rows of all samples (sample stride =
        # P1), pool, and lane-concatenate -> one (tb, P2*128) feature slab.
        pooled = []
        for p in range(P2):
            a = h2_ref[pl.ds(2 * p, tb, stride=P1), :]
            b = h2_ref[pl.ds(2 * p + 1, tb, stride=P1), :]
            pooled.append(jnp.maximum(a, b).astype(jnp.bfloat16))       # (tb, 128)
        feat = jnp.concatenate(pooled, axis=-1)                         # (tb, P2*128)

        # fc1 (single matmul) + ReLU.
        z = jnp.dot(feat, wf1_ref[...], preferred_element_type=jnp.float32)
        z = jnp.maximum(z + bf1_ref[...], 0.0).astype(jnp.bfloat16)     # (tb, 256)

        # fc2 (classes padded to a lane-dense 128) + stable log-softmax.
        logits = jnp.dot(z, wf2_ref[...],
                         preferred_element_type=jnp.float32) + bf2_ref[...]
        m = jnp.max(logits, axis=-1, keepdims=True)
        s = logits - m
        lse = jnp.log(jnp.sum(jnp.exp(s), axis=-1, keepdims=True))
        out_ref[...] = s - lse

    def full(shape):
        return pl.BlockSpec(shape, lambda b, _n=len(shape): (0,) * _n)

    out = pl.pallas_call(
        kernel,
        out_shape=jax.ShapeDtypeStruct((Bp, NPAD), jnp.float32),
        grid=(Bp // tb,),
        in_specs=[
            pl.BlockSpec((tb * L1, Cin * K1), lambda b: (b, 0)),
            full((Cin * K1, C1)), full((1, C1)),
            full((K2, C1, C2)), full((1, C2)),
            full((P2 * C2, FC1)), full((1, FC1)),
            full((FC1, NPAD)), full((1, NPAD)),
        ],
        out_specs=pl.BlockSpec((tb, NPAD), lambda b: (b, 0)),
        scratch_shapes=[
            pltpu.VMEM((tb * L1, C1), jnp.float32),   # conv1 output slab
            pltpu.VMEM((R2, C2), jnp.float32),        # conv2 output slab
        ],
        compiler_params=pltpu.CompilerParams(
            dimension_semantics=("parallel",)),
    )(patches, w1f, b1, w2t, b2, wf1p, bf1, wf2p, bf2p)

    return out[:B, :classes]


# ------------------------ pure-JAX reference (PyTorch semantics) -------------
def _maxpool1d(y):
    B, C, L = y.shape
    P = L // 2
    return y[:, :, :2 * P].reshape(B, C, P, 2).max(axis=-1)


def cnn1d_forward_ref(x_ncl, params):
    hp = jax.lax.Precision.HIGHEST
    y = jax.lax.conv_general_dilated(
        x_ncl, params["w1"], window_strides=(1,), padding="VALID",
        dimension_numbers=("NCH", "OIH", "NCH"), precision=hp)
    y = jnp.maximum(y + params["b1"][None, :, None], 0.0)
    y = _maxpool1d(y)
    y = jax.lax.conv_general_dilated(
        y, params["w2"], window_strides=(1,), padding="VALID",
        dimension_numbers=("NCH", "OIH", "NCH"), precision=hp)
    y = jnp.maximum(y + params["b2"][None, :, None], 0.0)
    y = _maxpool1d(y)
    y = y.reshape(y.shape[0], -1)                                # torch.flatten(x, 1)
    y = jnp.maximum(jnp.dot(y, params["wfc1"].T, precision=hp) + params["bfc1"], 0.0)
    y = jnp.dot(y, params["wfc2"].T, precision=hp) + params["bfc2"]
    return jax.nn.log_softmax(y, axis=1)


if __name__ == "__main__":
    # slice_len=38 -> L1=32, P1=16, L2=14, P2=7, fc1 in_features = 896.
    B, num_channels, slice_len, classes = 16, 4, 38, 3
    key = jax.random.PRNGKey(0)
    kp, kx = jax.random.split(key)
    params = make_params(kp, num_channels, slice_len, classes)
    x = jax.random.normal(kx, (B, num_channels, slice_len), jnp.float32)

    out = jax.block_until_ready(cnn1d_forward_pallas(x, params, tb=8))
    ref = cnn1d_forward_ref(x, params)

    assert out.shape == (B, classes)
    # Tolerance reflects bf16 matmul inputs (f32 accumulation) vs. f32 reference.
    np.testing.assert_allclose(np.asarray(out), np.asarray(ref),
                               rtol=5e-2, atol=5e-2)
    print("KERNEL_OK")
</pallas_src>

<mosaic_0001>
module attributes {stable_mosaic.version = 11 : i64} {
  func.func @kernel(%arg0: i32, %arg1: memref<256x28xbf16, #tpu.memory_space<vmem>>, %arg2: memref<28x64xbf16, #tpu.memory_space<vmem>>, %arg3: memref<1x64xf32, #tpu.memory_space<vmem>>, %arg4: memref<3x64x128xbf16, #tpu.memory_space<vmem>>, %arg5: memref<1x128xf32, #tpu.memory_space<vmem>>, %arg6: memref<896x256xbf16, #tpu.memory_space<vmem>>, %arg7: memref<1x256xf32, #tpu.memory_space<vmem>>, %arg8: memref<256x128xbf16, #tpu.memory_space<vmem>>, %arg9: memref<1x128xf32, #tpu.memory_space<vmem>>, %arg10: memref<8x128xf32, #tpu.memory_space<vmem>>, %arg11: memref<256x64xf32, #tpu.memory_space<vmem>>, %arg12: memref<126x128xf32, #tpu.memory_space<vmem>>) attributes {dimension_semantics = [#tpu.dimension_semantics<parallel>], iteration_bounds = array<i64: 2>, scalar_prefetch = 0 : i64, scratch_operands = 2 : i64, tpu.core_type = #tpu.core_type<tc>, window_params = [{transform_indices = @transform_0, window_bounds = array<i64: 256, 28>}, {pipeline_mode = #tpu.pipeline_mode<synchronous>, transform_indices = @transform_1, window_bounds = array<i64: 28, 64>}, {pipeline_mode = #tpu.pipeline_mode<synchronous>, transform_indices = @transform_2, window_bounds = array<i64: 1, 64>}, {pipeline_mode = #tpu.pipeline_mode<synchronous>, transform_indices = @transform_3, window_bounds = array<i64: 3, 64, 128>}, {pipeline_mode = #tpu.pipeline_mode<synchronous>, transform_indices = @transform_4, window_bounds = array<i64: 1, 128>}, {pipeline_mode = #tpu.pipeline_mode<synchronous>, transform_indices = @transform_5, window_bounds = array<i64: 896, 256>}, {pipeline_mode = #tpu.pipeline_mode<synchronous>, transform_indices = @transform_6, window_bounds = array<i64: 1, 256>}, {pipeline_mode = #tpu.pipeline_mode<synchronous>, transform_indices = @transform_7, window_bounds = array<i64: 256, 128>}, {pipeline_mode = #tpu.pipeline_mode<synchronous>, transform_indices = @transform_8, window_bounds = array<i64: 1, 128>}, {transform_indices = @transform_9, window_bounds = array<i64: 8, 128>}]} {
    %c0 = arith.constant 0 : index
    %c0_0 = arith.constant 0 : index
    %0 = vector.load %arg1[%c0, %c0_0] : memref<256x28xbf16, #tpu.memory_space<vmem>>, vector<256x28xbf16>
    %c0_1 = arith.constant 0 : index
    %c0_2 = arith.constant 0 : index
    %1 = vector.load %arg2[%c0_1, %c0_2] : memref<28x64xbf16, #tpu.memory_space<vmem>>, vector<28x64xbf16>
    %cst = arith.constant dense<0.000000e+00> : vector<256x64xf32>
    %2 = tpu.matmul %0, %1, %cst {dimension_numbers = #tpu.dot_dimension_numbers<[1], [0], [0], [1], [0, 0, 1, 1], [], []>} : vector<256x28xbf16>, vector<28x64xbf16>, vector<256x64xf32> -> vector<256x64xf32>
    %c0_3 = arith.constant 0 : index
    %c0_4 = arith.constant 0 : index
    %3 = vector.load %arg3[%c0_3, %c0_4] : memref<1x64xf32, #tpu.memory_space<vmem>>, vector<1x64xf32>
    %4 = vector.broadcast %3 : vector<1x64xf32> to vector<256x64xf32>
    %5 = arith.addf %2, %4 : vector<256x64xf32>
    %cst_5 = arith.constant 0.000000e+00 : f32
    %6 = vector.broadcast %cst_5 : f32 to vector<256x64xf32>
    %7 = arith.maximumf %5, %6 : vector<256x64xf32>
    %c0_6 = arith.constant 0 : index
    %c0_7 = arith.constant 0 : index
    %8 = vector.load %arg11[%c0_6, %c0_7] : memref<256x64xf32, #tpu.memory_space<vmem>>, vector<256x64xf32>
    tpu.vector_store %arg11[%c0_6, %c0_7], %7 {strides = array<i32>} : memref<256x64xf32, #tpu.memory_space<vmem>>, vector<256x64xf32>,
    %c0_8 = arith.constant 0 : index
    %c0_9 = arith.constant 0 : index
    %9 = tpu.strided_load %arg11[%c0_8, %c0_9] {strides = array<i32: 2, 1>} : memref<256x64xf32, #tpu.memory_space<vmem>>, vector<128x64xf32>
    %c1 = arith.constant 1 : index
    %c0_10 = arith.constant 0 : index
    %10 = tpu.strided_load %arg11[%c1, %c0_10] {strides = array<i32: 2, 1>} : memref<256x64xf32, #tpu.memory_space<vmem>>, vector<128x64xf32>
    %11 = arith.maximumf %9, %10 : vector<128x64xf32>
    %12 = arith.truncf %11 : vector<128x64xf32> to vector<128x64xbf16>
    %13 = vector.extract_strided_slice %12 {offsets = [0, 0], sizes = [126, 64], strides = [1, 1]} : vector<128x64xbf16> to vector<126x64xbf16>
    %c0_11 = arith.constant 0 : index
    %c0_12 = arith.constant 0 : index
    %c0_13 = arith.constant 0 : index
    %14 = vector.load %arg4[%c0_11, %c0_12, %c0_13] : memref<3x64x128xbf16, #tpu.memory_space<vmem>>, vector<1x64x128xbf16>
    %15 = vector.shape_cast %14 : vector<1x64x128xbf16> to vector<64x128xbf16>
    %cst_14 = arith.constant dense<0.000000e+00> : vector<126x128xf32>
    %16 = tpu.matmul %13, %15, %cst_14 {dimension_numbers = #tpu.dot_dimension_numbers<[1], [0], [0], [1], [0, 0, 1, 1], [], []>} : vector<126x64xbf16>, vector<64x128xbf16>, vector<126x128xf32> -> vector<126x128xf32>
    %17 = vector.extract_strided_slice %12 {offsets = [1, 0], sizes = [126, 64], strides = [1, 1]} : vector<128x64xbf16> to vector<126x64xbf16>
    %c1_15 = arith.constant 1 : index
    %c0_16 = arith.constant 0 : index
    %c0_17 = arith.constant 0 : index
    %18 = vector.load %arg4[%c1_15, %c0_16, %c0_17] : memref<3x64x128xbf16, #tpu.memory_space<vmem>>, vector<1x64x128xbf16>
    %19 = vector.shape_cast %18 : vector<1x64x128xbf16> to vector<64x128xbf16>
    %cst_18 = arith.constant dense<0.000000e+00> : vector<126x128xf32>
    %20 = tpu.matmul %17, %19, %cst_18 {dimension_numbers = #tpu.dot_dimension_numbers<[1], [0], [0], [1], [0, 0, 1, 1], [], []>} : vector<126x64xbf16>, vector<64x128xbf16>, vector<126x128xf32> -> vector<126x128xf32>
    %21 = arith.addf %16, %20 : vector<126x128xf32>
    %22 = vector.extract_strided_slice %12 {offsets = [2, 0], sizes = [126, 64], strides = [1, 1]} : vector<128x64xbf16> to vector<126x64xbf16>
    %c2 = arith.constant 2 : index
    %c0_19 = arith.constant 0 : index
    %c0_20 = arith.constant 0 : index
    %23 = vector.load %arg4[%c2, %c0_19, %c0_20] : memref<3x64x128xbf16, #tpu.memory_space<vmem>>, vector<1x64x128xbf16>
    %24 = vector.shape_cast %23 : vector<1x64x128xbf16> to vector<64x128xbf16>
    %cst_21 = arith.constant dense<0.000000e+00> : vector<126x128xf32>
    %25 = tpu.matmul %22, %24, %cst_21 {dimension_numbers = #tpu.dot_dimension_numbers<[1], [0], [0], [1], [0, 0, 1, 1], [], []>} : vector<126x64xbf16>, vector<64x128xbf16>, vector<126x128xf32> -> vector<126x128xf32>
    %26 = arith.addf %21, %25 : vector<126x128xf32>
    %c0_22 = arith.constant 0 : index
    %c0_23 = arith.constant 0 : index
    %27 = vector.load %arg5[%c0_22, %c0_23] : memref<1x128xf32, #tpu.memory_space<vmem>>, vector<1x128xf32>
    %28 = vector.broadcast %27 : vector<1x128xf32> to vector<126x128xf32>
    %29 = arith.addf %26, %28 : vector<126x128xf32>
    %cst_24 = arith.constant 0.000000e+00 : f32
    %30 = vector.broadcast %cst_24 : f32 to vector<126x128xf32>
    %31 = arith.maximumf %29, %30 : vector<126x128xf32>
    %c0_25 = arith.constant 0 : index
    %c0_26 = arith.constant 0 : index
    %32 = vector.load %arg12[%c0_25, %c0_26] : memref<126x128xf32, #tpu.memory_space<vmem>>, vector<126x128xf32>
    tpu.vector_store %arg12[%c0_25, %c0_26], %31 {strides = array<i32>} : memref<126x128xf32, #tpu.memory_space<vmem>>, vector<126x128xf32>,
    %c0_27 = arith.constant 0 : index
    %c0_28 = arith.constant 0 : index
    %33 = tpu.strided_load %arg12[%c0_27, %c0_28] {strides = array<i32: 16, 1>} : memref<126x128xf32, #tpu.memory_space<vmem>>, vector<8x128xf32>
    %c1_29 = arith.constant 1 : index
    %c0_30 = arith.constant 0 : index
    %34 = tpu.strided_load %arg12[%c1_29, %c0_30] {strides = array<i32: 16, 1>} : memref<126x128xf32, #tpu.memory_space<vmem>>, vector<8x128xf32>
    %35 = arith.maximumf %33, %34 : vector<8x128xf32>
    %36 = arith.truncf %35 : vector<8x128xf32> to vector<8x128xbf16>
    %c2_31 = arith.constant 2 : index
    %c0_32 = arith.constant 0 : index
    %37 = tpu.strided_load %arg12[%c2_31, %c0_32] {strides = array<i32: 16, 1>} : memref<126x128xf32, #tpu.memory_space<vmem>>, vector<8x128xf32>
    %c3 = arith.constant 3 : index
    %c0_33 = arith.constant 0 : index
    %38 = tpu.strided_load %arg12[%c3, %c0_33] {strides = array<i32: 16, 1>} : memref<126x128xf32, #tpu.memory_space<vmem>>, vector<8x128xf32>
    %39 = arith.maximumf %37, %38 : vector<8x128xf32>
    %40 = arith.truncf %39 : vector<8x128xf32> to vector<8x128xbf16>
    %c4 = arith.constant 4 : index
    %c0_34 = arith.constant 0 : index
    %41 = tpu.strided_load %arg12[%c4, %c0_34] {strides = array<i32: 16, 1>} : memref<126x128xf32, #tpu.memory_space<vmem>>, vector<8x128xf32>
    %c5 = arith.constant 5 : index
    %c0_35 = arith.constant 0 : index
    %42 = tpu.strided_load %arg12[%c5, %c0_35] {strides = array<i32: 16, 1>} : memref<126x128xf32, #tpu.memory_space<vmem>>, vector<8x128xf32>
    %43 = arith.maximumf %41, %42 : vector<8x128xf32>
    %44 = arith.truncf %43 : vector<8x128xf32> to vector<8x128xbf16>
    %c6 = arith.constant 6 : index
    %c0_36 = arith.constant 0 : index
    %45 = tpu.strided_load %arg12[%c6, %c0_36] {strides = array<i32: 16, 1>} : memref<126x128xf32, #tpu.memory_space<vmem>>, vector<8x128xf32>
    %c7 = arith.constant 7 : index
    %c0_37 = arith.constant 0 : index
    %46 = tpu.strided_load %arg12[%c7, %c0_37] {strides = array<i32: 16, 1>} : memref<126x128xf32, #tpu.memory_space<vmem>>, vector<8x128xf32>
    %47 = arith.maximumf %45, %46 : vector<8x128xf32>
    %48 = arith.truncf %47 : vector<8x128xf32> to vector<8x128xbf16>
    %c8 = arith.constant 8 : index
    %c0_38 = arith.constant 0 : index
    %49 = tpu.strided_load %arg12[%c8, %c0_38] {strides = array<i32: 16, 1>} : memref<126x128xf32, #tpu.memory_space<vmem>>, vector<8x128xf32>
    %c9 = arith.constant 9 : index
    %c0_39 = arith.constant 0 : index
    %50 = tpu.strided_load %arg12[%c9, %c0_39] {strides = array<i32: 16, 1>} : memref<126x128xf32, #tpu.memory_space<vmem>>, vector<8x128xf32>
    %51 = arith.maximumf %49, %50 : vector<8x128xf32>
    %52 = arith.truncf %51 : vector<8x128xf32> to vector<8x128xbf16>
    %c10 = arith.constant 10 : index
    %c0_40 = arith.constant 0 : index
    %53 = tpu.strided_load %arg12[%c10, %c0_40] {strides = array<i32: 16, 1>} : memref<126x128xf32, #tpu.memory_space<vmem>>, vector<8x128xf32>
    %c11 = arith.constant 11 : index
    %c0_41 = arith.constant 0 : index
    %54 = tpu.strided_load %arg12[%c11, %c0_41] {strides = array<i32: 16, 1>} : memref<126x128xf32, #tpu.memory_space<vmem>>, vector<8x128xf32>
    %55 = arith.maximumf %53, %54 : vector<8x128xf32>
    %56 = arith.truncf %55 : vector<8x128xf32> to vector<8x128xbf16>
    %c12 = arith.constant 12 : index
    %c0_42 = arith.constant 0 : index
    %57 = tpu.strided_load %arg12[%c12, %c0_42] {strides = array<i32: 16, 1>} : memref<126x128xf32, #tpu.memory_space<vmem>>, vector<8x128xf32>
    %c13 = arith.constant 13 : index
    %c0_43 = arith.constant 0 : index
    %58 = tpu.strided_load %arg12[%c13, %c0_43] {strides = array<i32: 16, 1>} : memref<126x128xf32, #tpu.memory_space<vmem>>, vector<8x128xf32>
    %59 = arith.maximumf %57, %58 : vector<8x128xf32>
    %60 = arith.truncf %59 : vector<8x128xf32> to vector<8x128xbf16>
    %61 = tpu.concatenate %36, %40, %44, %48, %52, %56, %60 in 1 : vector<8x128xbf16>, vector<8x128xbf16>, vector<8x128xbf16>, vector<8x128xbf16>, vector<8x128xbf16>, vector<8x128xbf16>, vector<8x128xbf16> -> vector<8x896xbf16>
    %c0_44 = arith.constant 0 : index
    %c0_45 = arith.constant 0 : index
    %62 = vector.load %arg6[%c0_44, %c0_45] : memref<896x256xbf16, #tpu.memory_space<vmem>>, vector<896x256xbf16>
    %cst_46 = arith.constant dense<0.000000e+00> : vector<8x256xf32>
    %63 = tpu.matmul %61, %62, %cst_46 {dimension_numbers = #tpu.dot_dimension_numbers<[1], [0], [0], [1], [0, 0, 1, 1], [], []>} : vector<8x896xbf16>, vector<896x256xbf16>, vector<8x256xf32> -> vector<8x256xf32>
    %c0_47 = arith.constant 0 : index
    %c0_48 = arith.constant 0 : index
    %64 = vector.load %arg7[%c0_47, %c0_48] : memref<1x256xf32, #tpu.memory_space<vmem>>, vector<1x256xf32>
    %65 = vector.broadcast %64 : vector<1x256xf32> to vector<8x256xf32>
    %66 = arith.addf %63, %65 : vector<8x256xf32>
    %cst_49 = arith.constant 0.000000e+00 : f32
    %67 = vector.broadcast %cst_49 : f32 to vector<8x256xf32>
    %68 = arith.maximumf %66, %67 : vector<8x256xf32>
    %69 = arith.truncf %68 : vector<8x256xf32> to vector<8x256xbf16>
    %c0_50 = arith.constant 0 : index
    %c0_51 = arith.constant 0 : index
    %70 = vector.load %arg8[%c0_50, %c0_51] : memref<256x128xbf16, #tpu.memory_space<vmem>>, vector<256x128xbf16>
    %cst_52 = arith.constant dense<0.000000e+00> : vector<8x128xf32>
    %71 = tpu.matmul %69, %70, %cst_52 {dimension_numbers = #tpu.dot_dimension_numbers<[1], [0], [0], [1], [0, 0, 1, 1], [], []>} : vector<8x256xbf16>, vector<256x128xbf16>, vector<8x128xf32> -> vector<8x128xf32>
    %c0_53 = arith.constant 0 : index
    %c0_54 = arith.constant 0 : index
    %72 = vector.load %arg9[%c0_53, %c0_54] : memref<1x128xf32, #tpu.memory_space<vmem>>, vector<1x128xf32>
    %73 = vector.broadcast %72 : vector<1x128xf32> to vector<8x128xf32>
    %74 = arith.addf %71, %73 : vector<8x128xf32>
    %cst_55 = arith.constant dense<0xFF800000> : vector<8xf32>
    %75 = vector.multi_reduction <maximumf>, %74, %cst_55 [1] : vector<8x128xf32> to vector<8xf32>
    %76 = vector.shape_cast %75 : vector<8xf32> to vector<8x1xf32>
    %77 = vector.broadcast %76 : vector<8x1xf32> to vector<8x128xf32>
    %78 = arith.subf %74, %77 : vector<8x128xf32>
    %79 = math.exp %78 : vector<8x128xf32>
    %cst_56 = arith.constant dense<0.000000e+00> : vector<8xf32>
    %80 = vector.multi_reduction <add>, %79, %cst_56 [1] : vector<8x128xf32> to vector<8xf32>
    %81 = vector.shape_cast %80 : vector<8xf32> to vector<8x1xf32>
    %82 = math.log %81 : vector<8x1xf32>
    %83 = vector.broadcast %82 : vector<8x1xf32> to vector<8x128xf32>
    %84 = arith.subf %78, %83 : vector<8x128xf32>
    %c0_57 = arith.constant 0 : index
    %c0_58 = arith.constant 0 : index
    %85 = vector.load %arg10[%c0_57, %c0_58] : memref<8x128xf32, #tpu.memory_space<vmem>>, vector<8x128xf32>
    tpu.vector_store %arg10[%c0_57, %c0_58], %84 {strides = array<i32>} : memref<8x128xf32, #tpu.memory_space<vmem>>, vector<8x128xf32>,
    return
  }
  func.func @transform_0(%arg0: i32) -> (i32, i32) {
    %c0_i32 = arith.constant 0 : i32
    %c0_i32_0 = arith.constant 0 : i32
    return %arg0, %c0_i32 : i32, i32
  }
  func.func @transform_1(%arg0: i32) -> (i32, i32) {
    %c0_i32 = arith.constant 0 : i32
    %c0_i32_0 = arith.constant 0 : i32
    %c0_i32_1 = arith.constant 0 : i32
    return %c0_i32, %c0_i32_0 : i32, i32
  }
  func.func @transform_2(%arg0: i32) -> (i32, i32) {
    %c0_i32 = arith.constant 0 : i32
    %c0_i32_0 = arith.constant 0 : i32
    %c0_i32_1 = arith.constant 0 : i32
    return %c0_i32, %c0_i32_0 : i32, i32
  }
  func.func @transform_3(%arg0: i32) -> (i32, i32, i32) {
    %c0_i32 = arith.constant 0 : i32
    %c0_i32_0 = arith.constant 0 : i32
    %c0_i32_1 = arith.constant 0 : i32
    %c0_i32_2 = arith.constant 0 : i32
    return %c0_i32, %c0_i32_0, %c0_i32_1 : i32, i32, i32
  }
  func.func @transform_4(%arg0: i32) -> (i32, i32) {
    %c0_i32 = arith.constant 0 : i32
    %c0_i32_0 = arith.constant 0 : i32
    %c0_i32_1 = arith.constant 0 : i32
    return %c0_i32, %c0_i32_0 : i32, i32
  }
  func.func @transform_5(%arg0: i32) -> (i32, i32) {
    %c0_i32 = arith.constant 0 : i32
    %c0_i32_0 = arith.constant 0 : i32
    %c0_i32_1 = arith.constant 0 : i32
    return %c0_i32, %c0_i32_0 : i32, i32
  }
  func.func @transform_6(%arg0: i32) -> (i32, i32) {
    %c0_i32 = arith.constant 0 : i32
    %c0_i32_0 = arith.constant 0 : i32
    %c0_i32_1 = arith.constant 0 : i32
    return %c0_i32, %c0_i32_0 : i32, i32
  }
  func.func @transform_7(%arg0: i32) -> (i32, i32) {
    %c0_i32 = arith.constant 0 : i32
    %c0_i32_0 = arith.constant 0 : i32
    %c0_i32_1 = arith.constant 0 : i32
    return %c0_i32, %c0_i32_0 : i32, i32
  }
  func.func @transform_8(%arg0: i32) -> (i32, i32) {
    %c0_i32 = arith.constant 0 : i32
    %c0_i32_0 = arith.constant 0 : i32
    %c0_i32_1 = arith.constant 0 : i32
    return %c0_i32, %c0_i32_0 : i32, i32
  }
  func.func @transform_9(%arg0: i32) -> (i32, i32) {
    %c0_i32 = arith.constant 0 : i32
    %c0_i32_0 = arith.constant 0 : i32
    return %arg0, %c0_i32 : i32, i32
  }
}

</mosaic_0001>

<llo_original>
// kernel: tpu_custom_call.1
$region0: #{tpu_custom_call.1}
  #allocation0 [shape = 'u32[]', space=smem, size = 0x4, offset = 0x4, fixed_abs, tag = 'smem constant byte address 0x4 - core index']
  #allocation1 [shape = 'u32[72,128]{1,0:T(1,128)}', space=vmem, size = 0x9000, scoped, tag = 'internal scratch']
  #allocation2 [shape = 'f32[256,64]{1,0:T(8,128)}', space=vmem, size = 0x20000, scoped, tag = 'scratch operand']
  #allocation3 [shape = 'f32[126,128]{1,0:T(8,128)}', space=vmem, size = 0x10000, scoped, tag = 'scratch operand']
  %s0 = inlined_call_operand.vmem [shape: bf16[512,28], index: 0, kind: input, shape index: {}]
  %s1 = inlined_call_operand.vmem [shape: bf16[28,64], index: 1, kind: input, shape index: {}]
  %s2 = inlined_call_operand.vmem [shape: f32[1,64], index: 2, kind: input, shape index: {}]
  %s3 = inlined_call_operand.vmem [shape: bf16[3,64,128], index: 3, kind: input, shape index: {}]
  %s4 = inlined_call_operand.vmem [shape: f32[1,128], index: 4, kind: input, shape index: {}]
  %s5 = inlined_call_operand.hbm [shape: bf16[896,256], index: 5, kind: input, shape index: {}]
  %s6 = inlined_call_operand.vmem [shape: f32[1,256], index: 6, kind: input, shape index: {}]
  %s7 = inlined_call_operand.vmem [shape: bf16[256,128], index: 7, kind: input, shape index: {}]
  %s8 = inlined_call_operand.vmem [shape: f32[1,128], index: 8, kind: input, shape index: {}]
  %s9 = inlined_call_operand.hbm [shape: f32[16,128], index: 9, kind: output, shape index: {}]
  %s10 = sld [smem:[#allocation0]]
  $region73: #{tpu_custom_call.1} parent=0
    _
  %s12 = ssub.s32 1, %s10
  %s13 = scalar_select 0, %s12, %s10
  $region1: #{tpu_custom_call.1} parent=0
    #allocation4 [shape = 'u8[458752]{0}', space=vmem, size = 0x70000, scoped, tag = 'input window, operand 5, single buffered']
    #allocation5 [shape = 's32[2]{0}', space=sflag, size = 0x8, scoped, tag = 'scoped memory for tpu_custom_call.1']
    #allocation6 [shape = 's32[2]{0}', space=sflag, size = 0x8, scoped, tag = 'scoped memory for tpu_custom_call.1']
    #allocation7 [shape = 'u8[8192]{0}', space=vmem, size = 0x2000, scoped, tag = 'output window, operand 0']
    %14 = vsyncpa [#allocation5], 0
    %15 = vsyncpa [#allocation6], 0
    %s16 = scalar_lea.sflag [#allocation6], 1
    %17 = vsyncpa %s16, 0
    loop: start=0, step=1, limit=4
    $region2: #{tpu_custom_call.1} parent=1 // loop_pre_header
      _
    $region3: #{tpu_custom_call.1} parent=1 // loop_header
      %s19 = sphi 0, %s23
      %p20 = scmp.ge.s32.totalorder %s19, 4
      %s29 = sphi 0, %s31
      %s32 = sphi 0, %s29
      %s33 = sphi 0, %s32
      %s49 = sphi 0, %s33
      %s53 = sphi 0, %s53
      %s55 = sphi 0, %s53
      %s56 = sphi 0, %s55
      %s70 = sphi 0, %s56
      %s74 = sphi 0, %s74
      %s76 = sphi 0, %s74
      %s77 = sphi 0, %s76
      %s91 = sphi 0, %s77
      %s95 = sphi 0, %s95
      %s97 = sphi 0, %s95
      %s98 = sphi 0, %s97
      %s112 = sphi 0, %s98
      %s116 = sphi 0, %s116
      %s118 = sphi 0, %s116
      %s119 = sphi 0, %s118
      %s133 = sphi 0, %s119
      %s137 = sphi 0, %s137
      %s139 = sphi 0, %s137
      %s140 = sphi 0, %s139
      %s154 = sphi 0, %s140
      %s158 = sphi 0, %s158
      %s160 = sphi 0, %s158
      %s161 = sphi 0, %s160
      %s175 = sphi 0, %s161
      %s179 = sphi 0, %s179
      %s181 = sphi 0, %s179
      %s182 = sphi 0, %s181
      %s196 = sphi 0, %s182
      %s200 = sphi 0, %s200
      %s202 = sphi 0, %s200
      %s203 = sphi 0, %s202
      %s217 = sphi 0, %s203
      %s223 = sphi 0, %s225
      %s226 = sphi 0, %s223
      %s227 = sphi 0, %s226
      %s243 = sphi 0, %s227
    $region4: #{tpu_custom_call.1} parent=1 // loop_header_branch
      %22 = sbr.rel (%p20) target = $region8
    $region5: #{tpu_custom_call.1} parent=1 // loop_body
      %s24 = ssub.s32 %s19, 1
      %s25 = ssub.s32 %s19, 2
      %s26 = sadd.s32 %s19, 1
      %s27 = ssub.s32 %s19, %s26
      %p28 = scmp.eq.s32.totalorder %s27, 0
      %s30 = sadd.s32 %s29, 1
      %s31 = scalar_select %p28, %s29, %s30
      %p34 = pneg %p28
      %p35 = scmp.eq.s32.totalorder %s19, 1
      %p36 = por %p34, %p35
      %p37 = scmp.ne.s32.totalorder %s29, %s32
      %p38 = scmp.eq.s32.totalorder %s19, 0
      %p39 = por %p37, %p38
      %p40 = scmp.ne.s32.totalorder %s29, %s32
      %p41 = scmp.eq.s32.totalorder %s24, 1
      %p42 = por %p40, %p41
      %p43 = scmp.ne.s32.totalorder %s32, %s33
      %p44 = scmp.eq.s32.totalorder %s24, 0
      %p45 = por %p43, %p44
      %p46 = scmp.ne.s32.totalorder %s32, %s33
      %p47 = scmp.eq.s32.totalorder %s25, 1
      %p48 = por %p46, %p47
      %p50 = scmp.ne.s32.totalorder %s33, %s49
      %p51 = scmp.eq.s32.totalorder %s25, 0
      %p52 = por %p50, %p51
      %s54 = sadd.s32 %s53, 1
      %p57 = scmp.eq.s32.totalorder %s19, 1
      %p58 = scmp.ne.s32.totalorder %s53, %s55
      %p59 = scmp.eq.s32.totalorder %s19, 0
      %p60 = por %p58, %p59
      %p61 = scmp.ne.s32.totalorder %s53, %s55
      %p62 = scmp.eq.s32.totalorder %s24, 1
      %p63 = por %p61, %p62
      %p64 = scmp.ne.s32.totalorder %s55, %s56
      %p65 = scmp.eq.s32.totalorder %s24, 0
      %p66 = por %p64, %p65
      %p67 = scmp.ne.s32.totalorder %s55, %s56
      %p68 = scmp.eq.s32.totalorder %s25, 1
      %p69 = por %p67, %p68
      %p71 = scmp.ne.s32.totalorder %s56, %s70
      %p72 = scmp.eq.s32.totalorder %s25, 0
      %p73 = por %p71, %p72
      %s75 = sadd.s32 %s74, 1
      %p78 = scmp.eq.s32.totalorder %s19, 1
      %p79 = scmp.ne.s32.totalorder %s74, %s76
      %p80 = scmp.eq.s32.totalorder %s19, 0
      %p81 = por %p79, %p80
      %p82 = scmp.ne.s32.totalorder %s74, %s76
      %p83 = scmp.eq.s32.totalorder %s24, 1
      %p84 = por %p82, %p83
      %p85 = scmp.ne.s32.totalorder %s76, %s77
      %p86 = scmp.eq.s32.totalorder %s24, 0
      %p87 = por %p85, %p86
      %p88 = scmp.ne.s32.totalorder %s76, %s77
      %p89 = scmp.eq.s32.totalorder %s25, 1
      %p90 = por %p88, %p89
      %p92 = scmp.ne.s32.totalorder %s77, %s91
      %p93 = scmp.eq.s32.totalorder %s25, 0
      %p94 = por %p92, %p93
      %s96 = sadd.s32 %s95, 1
      %p99 = scmp.eq.s32.totalorder %s19, 1
      %p100 = scmp.ne.s32.totalorder %s95, %s97
      %p101 = scmp.eq.s32.totalorder %s19, 0
      %p102 = por %p100, %p101
      %p103 = scmp.ne.s32.totalorder %s95, %s97
      %p104 = scmp.eq.s32.totalorder %s24, 1
      %p105 = por %p103, %p104
      %p106 = scmp.ne.s32.totalorder %s97, %s98
      %p107 = scmp.eq.s32.totalorder %s24, 0
      %p108 = por %p106, %p107
      %p109 = scmp.ne.s32.totalorder %s97, %s98
      %p110 = scmp.eq.s32.totalorder %s25, 1
      %p111 = por %p109, %p110
      %p113 = scmp.ne.s32.totalorder %s98, %s112
      %p114 = scmp.eq.s32.totalorder %s25, 0
      %p115 = por %p113, %p114
      %s117 = sadd.s32 %s116, 1
      %p120 = scmp.eq.s32.totalorder %s19, 1
      %p121 = scmp.ne.s32.totalorder %s116, %s118
      %p122 = scmp.eq.s32.totalorder %s19, 0
      %p123 = por %p121, %p122
      %p124 = scmp.ne.s32.totalorder %s116, %s118
      %p125 = scmp.eq.s32.totalorder %s24, 1
      %p126 = por %p124, %p125
      %p127 = scmp.ne.s32.totalorder %s118, %s119
      %p128 = scmp.eq.s32.totalorder %s24, 0
      %p129 = por %p127, %p128
      %p130 = scmp.ne.s32.totalorder %s118, %s119
      %p131 = scmp.eq.s32.totalorder %s25, 1
      %p132 = por %p130, %p131
      %p134 = scmp.ne.s32.totalorder %s119, %s133
      %p135 = scmp.eq.s32.totalorder %s25, 0
      %p136 = por %p134, %p135
      %s138 = sadd.s32 %s137, 1
      %p141 = scmp.eq.s32.totalorder %s19, 1
      %p142 = scmp.ne.s32.totalorder %s137, %s139
      %p143 = scmp.eq.s32.totalorder %s19, 0
      %p144 = por %p142, %p143
      %p145 = scmp.ne.s32.totalorder %s137, %s139
      %p146 = scmp.eq.s32.totalorder %s24, 1
      %p147 = por %p145, %p146
      %p148 = scmp.ne.s32.totalorder %s139, %s140
      %p149 = scmp.eq.s32.totalorder %s24, 0
      %p150 = por %p148, %p149
      %p151 = scmp.ne.s32.totalorder %s139, %s140
      %p152 = scmp.eq.s32.totalorder %s25, 1
      %p153 = por %p151, %p152
      %p155 = scmp.ne.s32.totalorder %s140, %s154
      %p156 = scmp.eq.s32.totalorder %s25, 0
      %p157 = por %p155, %p156
      %s159 = sadd.s32 %s158, 1
      %p162 = scmp.eq.s32.totalorder %s19, 1
      %p163 = scmp.ne.s32.totalorder %s158, %s160
      %p164 = scmp.eq.s32.totalorder %s19, 0
      %p165 = por %p163, %p164
      %p166 = scmp.ne.s32.totalorder %s158, %s160
      %p167 = scmp.eq.s32.totalorder %s24, 1
      %p168 = por %p166, %p167
      %p169 = scmp.ne.s32.totalorder %s160, %s161
      %p170 = scmp.eq.s32.totalorder %s24, 0
      %p171 = por %p169, %p170
      %p172 = scmp.ne.s32.totalorder %s160, %s161
      %p173 = scmp.eq.s32.totalorder %s25, 1
      %p174 = por %p172, %p173
      %p176 = scmp.ne.s32.totalorder %s161, %s175
      %p177 = scmp.eq.s32.totalorder %s25, 0
      %p178 = por %p176, %p177
      %s180 = sadd.s32 %s179, 1
      %p183 = scmp.eq.s32.totalorder %s19, 1
      %p184 = scmp.ne.s32.totalorder %s179, %s181
      %p185 = scmp.eq.s32.totalorder %s19, 0
      %p186 = por %p184, %p185
      %p187 = scmp.ne.s32.totalorder %s179, %s181
      %p188 = scmp.eq.s32.totalorder %s24, 1
      %p189 = por %p187, %p188
      %p190 = scmp.ne.s32.totalorder %s181, %s182
      %p191 = scmp.eq.s32.totalorder %s24, 0
      %p192 = por %p190, %p191
      %p193 = scmp.ne.s32.totalorder %s181, %s182
      %p194 = scmp.eq.s32.totalorder %s25, 1
      %p195 = por %p193, %p194
      %p197 = scmp.ne.s32.totalorder %s182, %s196
      %p198 = scmp.eq.s32.totalorder %s25, 0
      %p199 = por %p197, %p198
      %s201 = sadd.s32 %s200, 1
      %p204 = scmp.eq.s32.totalorder %s19, 1
      %p205 = scmp.ne.s32.totalorder %s200, %s202
      %p206 = scmp.eq.s32.totalorder %s19, 0
      %p207 = por %p205, %p206
      %p208 = scmp.ne.s32.totalorder %s200, %s202
      %p209 = scmp.eq.s32.totalorder %s24, 1
      %p210 = por %p208, %p209
      %p211 = scmp.ne.s32.totalorder %s202, %s203
      %p212 = scmp.eq.s32.totalorder %s24, 0
      %p213 = por %p211, %p212
      %p214 = scmp.ne.s32.totalorder %s202, %s203
      %p215 = scmp.eq.s32.totalorder %s25, 1
      %p216 = por %p214, %p215
      %p218 = scmp.ne.s32.totalorder %s203, %s217
      %p219 = scmp.eq.s32.totalorder %s25, 0
      %p220 = por %p218, %p219
      %s221 = ssub.s32 %s19, %s26
      %p222 = scmp.eq.s32.totalorder %s221, 0
      %s224 = sadd.s32 %s223, 1
      %s225 = scalar_select %p222, %s223, %s224
      %p228 = pneg %p222
      %p229 = scmp.eq.s32.totalorder %s19, 1
      %p230 = por %p228, %p229
      %p231 = scmp.ne.s32.totalorder %s223, %s226
      %p232 = scmp.eq.s32.totalorder %s19, 0
      %p233 = por %p231, %p232
      %p234 = scmp.ne.s32.totalorder %s223, %s226
      %p235 = scmp.eq.s32.totalorder %s24, 1
      %p236 = por %p234, %p235
      %p237 = scmp.ne.s32.totalorder %s226, %s227
      %p238 = scmp.eq.s32.totalorder %s24, 0
      %p239 = por %p237, %p238
      %p240 = scmp.ne.s32.totalorder %s226, %s227
      %p241 = scmp.eq.s32.totalorder %s25, 1
      %p242 = por %p240, %p241
      %p244 = scmp.ne.s32.totalorder %s227, %s243
      %p245 = scmp.eq.s32.totalorder %s25, 0
      %p246 = por %p244, %p245
      %p247 = scmp.le.s32.totalorder 1, %s19
      %p248 = scmp.lt.s32.totalorder %s19, 3
      %p249 = pnand %p247, %p248
      %p250 = pneg %p249
      // Predicated region
      $region9: #{tpu_custom_call.1} parent=5 // pred_check
        _
      $region10: #{tpu_custom_call.1} parent=5 // pred_check_branch
        %252 = sbr.rel (%p249) target = $region12
      $region11: #{tpu_custom_call.1} parent=5 // pred_region
        %s253 = ssub.s32 %s19, 1
        // Predicated region
        $region13: #{tpu_custom_call.1} parent=11 // pred_check
          %p254 = pneg %p66
        $region14: #{tpu_custom_call.1} parent=11 // pred_check_branch
          %256 = sbr.rel (%p254) target = $region16
        $region15: #{tpu_custom_call.1} parent=11 // pred_region
          _
        $region16: #{tpu_custom_call.1} parent=11 // pred_fallthru
          _
        // Predicated region
        $region17: #{tpu_custom_call.1} parent=11 // pred_check
          %p257 = pneg %p87
        $region18: #{tpu_custom_call.1} parent=11 // pred_check_branch
          %259 = sbr.rel (%p257) target = $region20
        $region19: #{tpu_custom_call.1} parent=11 // pred_region
          _
        $region20: #{tpu_custom_call.1} parent=11 // pred_fallthru
          _
        // Predicated region
        $region21: #{tpu_custom_call.1} parent=11 // pred_check
          %p260 = pneg %p108
        $region22: #{tpu_custom_call.1} parent=11 // pred_check_branch
          %262 = sbr.rel (%p260) target = $region24
        $region23: #{tpu_custom_call.1} parent=11 // pred_region
          _
        $region24: #{tpu_custom_call.1} parent=11 // pred_fallthru
          _
        // Predicated region
        $region25: #{tpu_custom_call.1} parent=11 // pred_check
          %p263 = pneg %p129
        $region26: #{tpu_custom_call.1} parent=11 // pred_check_branch
          %265 = sbr.rel (%p263) target = $region28
        $region27: #{tpu_custom_call.1} parent=11 // pred_region
          _
        $region28: #{tpu_custom_call.1} parent=11 // pred_fallthru
          _
        // Predicated region
        $region29: #{tpu_custom_call.1} parent=11 // pred_check
          %p266 = pneg %p150
        $region30: #{tpu_custom_call.1} parent=11 // pred_check_branch
          %268 = sbr.rel (%p266) target = $region32
        $region31: #{tpu_custom_call.1} parent=11 // pred_region
          %270 = vsyncadd [#allocation5], 0
          %s271 = sshll.u32 %s5, 4
          %s272 = int_to_ptr.hbm [resolvable:$true] %s271
          %s273 = sshll.u32 [#allocation4], 4
          %s274 = int_to_ptr.vmem [resolvable:$true] %s273
          %279 = dma.hbm_to_vmem [thread:$0]  %s272, 14336, %s274, [#allocation5], 128, 128, 8
        $region32: #{tpu_custom_call.1} parent=11 // pred_fallthru
          _
        // Predicated region
        $region33: #{tpu_custom_call.1} parent=11 // pred_check
          %p280 = pneg %p171
        $region34: #{tpu_custom_call.1} parent=11 // pred_check_branch
          %282 = sbr.rel (%p280) target = $region36
        $region35: #{tpu_custom_call.1} parent=11 // pred_region
          _
        $region36: #{tpu_custom_call.1} parent=11 // pred_fallthru
          _
        // Predicated region
        $region37: #{tpu_custom_call.1} parent=11 // pred_check
          %p283 = pneg %p192
        $region38: #{tpu_custom_call.1} parent=11 // pred_check_branch
          %285 = sbr.rel (%p283) target = $region40
        $region39: #{tpu_custom_call.1} parent=11 // pred_region
          _
        $region40: #{tpu_custom_call.1} parent=11 // pred_fallthru
          _
        // Predicated region
        $region41: #{tpu_custom_call.1} parent=11 // pred_check
          %p286 = pneg %p213
        $region42: #{tpu_custom_call.1} parent=11 // pred_check_branch
          %288 = sbr.rel (%p286) target = $region44
        $region43: #{tpu_custom_call.1} parent=11 // pred_region
          _
        $region44: #{tpu_custom_call.1} parent=11 // pred_fallthru
          _
      $region12: #{tpu_custom_call.1} parent=5 // pred_fallthru
        _
      %p289 = scmp.lt.s32.totalorder %s19, 2
      // Predicated region
      $region45: #{tpu_custom_call.1} parent=5 // pred_check
        %p290 = pneg %p289
      $region46: #{tpu_custom_call.1} parent=5 // pred_check_branch
        %292 = sbr.rel (%p290) target = $region48
      $region47: #{tpu_custom_call.1} parent=5 // pred_region
        // Predicated region
        $region49: #{tpu_custom_call.1} parent=47 // pred_check
          %p293 = pneg %p39
        $region50: #{tpu_custom_call.1} parent=47 // pred_check_branch
          %295 = sbr.rel (%p293) target = $region52
        $region51: #{tpu_custom_call.1} parent=47 // pred_region
          %s296 = smul.u32 32, %s19
          %p297 = scmp.lt.s32.totalorder %s296, 63
          %s298 = scalar_select %p297, %s296, 63
          %s299 = smul.addr %s298, 4
          %s300 = scalar_lea.vmem %s0, %s299
          %s301 = smul.u32 32, %s19
        $region52: #{tpu_custom_call.1} parent=47 // pred_fallthru
          _
      $region48: #{tpu_custom_call.1} parent=5 // pred_fallthru
        _
      %p302 = scmp.le.s32.totalorder 1, %s19
      %p303 = scmp.lt.s32.totalorder %s19, 3
      %p304 = pnand %p302, %p303
      %p305 = pneg %p304
      // Predicated region
      $region53: #{tpu_custom_call.1} parent=5 // pred_check
        _
      $region54: #{tpu_custom_call.1} parent=5 // pred_check_branch
        %307 = sbr.rel (%p304) target = $region56
      $region55: #{tpu_custom_call.1} parent=5 // pred_region
        %s308 = ssub.s32 %s19, 1
        // Predicated region
        $region57: #{tpu_custom_call.1} parent=55 // pred_check
          %p309 = pneg %p150
        $region58: #{tpu_custom_call.1} parent=55 // pred_check_branch
          %311 = sbr.rel (%p309) target = $region60
        $region59: #{tpu_custom_call.1} parent=55 // pred_region
          %313 = dma.done [#allocation5], 14336
        $region60: #{tpu_custom_call.1} parent=55 // pred_fallthru
          _
        %s314 = smul.u32 32, %s24
        %p315 = scmp.lt.s32.totalorder %s314, 63
        %s316 = scalar_select %p315, %s314, 63
        %s317 = smul.addr %s316, 4
        %s318 = scalar_lea.vmem %s0, %s317
        %p319 = pneg %p45
        %p320 = pneg %p42
        %p321 = pneg %p66
        %p322 = pneg %p63
        %p323 = pneg %p87
        %p324 = pneg %p84
        %p325 = pneg %p108
        %p326 = pneg %p105
        %p327 = pneg %p129
        %p328 = pneg %p126
        %p329 = pneg %p150
        %p330 = pneg %p147
        %p331 = pneg %p171
        %p332 = pneg %p168
        %p333 = pneg %p192
        %p334 = pneg %p189
        %p335 = pneg %p213
        %p336 = pneg %p210
        %p337 = pneg %p239
        %p338 = pneg %p236
        %s339 = sand.u32 %s226, 1
        %s340 = scalar_lea.sflag [#allocation6], %s339
        %s341 = sand.u32 %s226, 1
        %s342 = smul.addr %s341, 8
        %s343 = scalar_lea.vmem [#allocation7], %s342
        %s344 = smul.u32 32, %s24
        %p345 = scmp.lt.s32.totalorder %s344, 63
        %s346 = scalar_select %p345, %s344, 63
        %s347 = smul.addr %s346, 4
        %s348 = scalar_lea.vmem %s0, %s347
        %s349 = smul.u32 32, %s24
        %v351 = vld [vmem:[%s348] sm:$0xf]
        %v352 = vld [vmem:[%s348 + $0x4] sm:$0xf]
        %v353 = vld [vmem:[%s348 + $0x8] sm:$0xf]
        %v354 = vld [vmem:[%s348 + $0xc] sm:$0xf]
        %v355 = vld [vmem:[%s348 + $0x10] sm:$0xf]
        %v356 = vld [vmem:[%s348 + $0x14] sm:$0xf]
        %v357 = vld [vmem:[%s348 + $0x18] sm:$0xf]
        %v358 = vld [vmem:[%s348 + $0x1c] sm:$0xf]
        %v359 = vld [vmem:[%s348 + $0x20] sm:$0xf]
        %v360 = vld [vmem:[%s348 + $0x24] sm:$0xf]
        %v361 = vld [vmem:[%s348 + $0x28] sm:$0xf]
        %v362 = vld [vmem:[%s348 + $0x2c] sm:$0xf]
        %v363 = vld [vmem:[%s348 + $0x30] sm:$0xf]
        %v364 = vld [vmem:[%s348 + $0x34] sm:$0xf]
        %v365 = vld [vmem:[%s348 + $0x38] sm:$0xf]
        %v366 = vld [vmem:[%s348 + $0x3c] sm:$0xf]
        %v367 = vld [vmem:[%s348 + $0x40] sm:$0xf]
        %v368 = vld [vmem:[%s348 + $0x44] sm:$0xf]
        %v369 = vld [vmem:[%s348 + $0x48] sm:$0xf]
        %v370 = vld [vmem:[%s348 + $0x4c] sm:$0xf]
        %v371 = vld [vmem:[%s348 + $0x50] sm:$0xf]
        %v372 = vld [vmem:[%s348 + $0x54] sm:$0xf]
        %v373 = vld [vmem:[%s348 + $0x58] sm:$0xf]
        %v374 = vld [vmem:[%s348 + $0x5c] sm:$0xf]
        %v375 = vld [vmem:[%s348 + $0x60] sm:$0xf]
        %v376 = vld [vmem:[%s348 + $0x64] sm:$0xf]
        %v377 = vld [vmem:[%s348 + $0x68] sm:$0xf]
        %v378 = vld [vmem:[%s348 + $0x6c] sm:$0xf]
        %v379 = vld [vmem:[%s348 + $0x70] sm:$0xf]
        %v380 = vld [vmem:[%s348 + $0x74] sm:$0xf]
        %v381 = vld [vmem:[%s348 + $0x78] sm:$0xf]
        %v382 = vld [vmem:[%s348 + $0x7c] sm:$0xf]
        %v383 = vld [vmem:[%s1] sm:$0xf]
        %v384 = vld [vmem:[%s1 + $0x4] sm:$0xf]
        %v385 = vld [vmem:[%s1 + $0x8] sm:$0xf]
        %v386 = vld [vmem:[%s1 + $0xc] sm:$0x3]
        %v387 = vld [vmem:[%s2] sm:$0x1]
        %v389 = vperm.slane %v387, 0
        %v423 = vunpack.c.l.b16 %v351
        %v424 = vunpack.c.l.b16 %v352
        %v425 = vunpack.c.l.b16 %v353
        %v426 = vunpack.c.l.b16 %v354
        %v427 = vunpack.c.l.b16 %v355
        %v428 = vunpack.c.l.b16 %v356
        %v429 = vunpack.c.l.b16 %v357
        %v430 = vunpack.c.l.b16 %v358
        %v431 = vunpack.c.l.b16 %v359
        %v432 = vunpack.c.l.b16 %v360
        %v433 = vunpack.c.l.b16 %v361
        %v434 = vunpack.c.l.b16 %v362
        %v435 = vunpack.c.l.b16 %v363
        %v436 = vunpack.c.l.b16 %v364
        %v437 = vunpack.c.l.b16 %v365
        %v438 = vunpack.c.l.b16 %v366
        %v439 = vunpack.c.l.b16 %v367
        %v440 = vunpack.c.l.b16 %v368
        %v441 = vunpack.c.l.b16 %v369
        %v442 = vunpack.c.l.b16 %v370
        %v443 = vunpack.c.l.b16 %v371
        %v444 = vunpack.c.l.b16 %v372
        %v445 = vunpack.c.l.b16 %v373
        %v446 = vunpack.c.l.b16 %v374
        %v447 = vunpack.c.l.b16 %v375
        %v448 = vunpack.c.l.b16 %v376
        %v449 = vunpack.c.l.b16 %v377
        %v450 = vunpack.c.l.b16 %v378
        %v451 = vunpack.c.l.b16 %v379
        %v452 = vunpack.c.l.b16 %v380
        %v453 = vunpack.c.l.b16 %v381
        %v454 = vunpack.c.l.b16 %v382
        %v455 = vpack.c.b16 %v424, %v423
        %v456 = vpack.c.b16 %v426, %v425
        %v457 = vpack.c.b16 %v428, %v427
        %v458 = vpack.c.b16 %v430, %v429
        %v459 = vpack.c.b16 %v432, %v431
        %v460 = vpack.c.b16 %v434, %v433
        %v461 = vpack.c.b16 %v436, %v435
        %v462 = vpack.c.b16 %v438, %v437
        %v463 = vpack.c.b16 %v440, %v439
        %v464 = vpack.c.b16 %v442, %v441
        %v465 = vpack.c.b16 %v444, %v443
        %v466 = vpack.c.b16 %v446, %v445
        %v467 = vpack.c.b16 %v448, %v447
        %v468 = vpack.c.b16 %v450, %v449
        %v469 = vpack.c.b16 %v452, %v451
        %v470 = vpack.c.b16 %v454, %v453
        %v475 = vunpack.c.l.b16 %v383
        %v476 = vunpack.c.l.b16 %v384
        %v477 = vunpack.c.l.b16 %v385
        %v478 = vunpack.c.l.b16 %v386
        %v479 = vpack.c.b16 %v476, %v475
        %v480 = vpack.c.b16 %v478, %v477
        %vm482 = vcmask 228352
        %v484 = vsel %vm482, %v455, 0
        %v487 = vsel %vm482, %v456, 0
        %v490 = vsel %vm482, %v457, 0
        %v493 = vsel %vm482, %v458, 0
        %v496 = vsel %vm482, %v459, 0
        %v499 = vsel %vm482, %v460, 0
        %v502 = vsel %vm482, %v461, 0
        %v505 = vsel %vm482, %v462, 0
        %v508 = vsel %vm482, %v463, 0
        %v511 = vsel %vm482, %v464, 0
        %v514 = vsel %vm482, %v465, 0
        %v517 = vsel %vm482, %v466, 0
        %v520 = vsel %vm482, %v467, 0
        %v523 = vsel %vm482, %v468, 0
        %v526 = vsel %vm482, %v469, 0
        %v529 = vsel %vm482, %v470, 0
        %vm531 = vcmask 1045504
        %v533 = vsel %vm531, %v480, 0
        %535 = vmatpush.bf16.msra.mxu0 0
        %536 = vmatpush.bf16.msra.mxu0 0
        %537 = vmatpush.bf16.msra.mxu0 0
        %538 = vmatpush.bf16.msra.mxu0 0
        %539 = vmatpush.bf16.msra.mxu0 0
        %540 = vmatpush.bf16.msra.mxu0 0
        %541 = vmatpush.bf16.msra.mxu0 %v533
        %542 = vmatpush.bf16.msra.mxu0 %v479
        %543 = vmatmul.bf16.gmra.mxu0 %v484
        %v544 = vpop.f32.mrf.mxu0
        %v545 = vadd.f32 %v389, %v544
        %v546 = vpop.f32.mrf.mxu0
        %v547 = vadd.f32 %v389, %v546
        %548 = vmatmul.bf16.gmra.mxu0 %v487
        %v549 = vpop.f32.mrf.mxu0
        %v550 = vadd.f32 %v389, %v549
        %v551 = vpop.f32.mrf.mxu0
        %v552 = vadd.f32 %v389, %v551
        %553 = vmatmul.bf16.gmra.mxu0 %v490
        %v554 = vpop.f32.mrf.mxu0
        %v555 = vadd.f32 %v389, %v554
        %v556 = vpop.f32.mrf.mxu0
        %v557 = vadd.f32 %v389, %v556
        %558 = vmatmul.bf16.gmra.mxu0 %v493
        %v559 = vpop.f32.mrf.mxu0
        %v560 = vadd.f32 %v389, %v559
        %v561 = vpop.f32.mrf.mxu0
        %v562 = vadd.f32 %v389, %v561
        %563 = vmatmul.bf16.gmra.mxu0 %v496
        %v564 = vpop.f32.mrf.mxu0
        %v565 = vadd.f32 %v389, %v564
        %v566 = vpop.f32.mrf.mxu0
        %v567 = vadd.f32 %v389, %v566
        %568 = vmatmul.bf16.gmra.mxu0 %v499
        %v569 = vpop.f32.mrf.mxu0
        %v570 = vadd.f32 %v389, %v569
        %v571 = vpop.f32.mrf.mxu0
        %v572 = vadd.f32 %v389, %v571
        %573 = vmatmul.bf16.gmra.mxu0 %v502
        %v574 = vpop.f32.mrf.mxu0
        %v575 = vadd.f32 %v389, %v574
        %v576 = vpop.f32.mrf.mxu0
        %v577 = vadd.f32 %v389, %v576
        %578 = vmatmul.bf16.gmra.mxu0 %v505
        %v579 = vpop.f32.mrf.mxu0
        %v580 = vadd.f32 %v389, %v579
        %v581 = vpop.f32.mrf.mxu0
        %v582 = vadd.f32 %v389, %v581
        %583 = vmatmul.bf16.gmra.mxu0 %v508
        %v584 = vpop.f32.mrf.mxu0
        %v585 = vadd.f32 %v389, %v584
        %v586 = vpop.f32.mrf.mxu0
        %v587 = vadd.f32 %v389, %v586
        %588 = vmatmul.bf16.gmra.mxu0 %v511
        %v589 = vpop.f32.mrf.mxu0
        %v590 = vadd.f32 %v389, %v589
        %v591 = vpop.f32.mrf.mxu0
        %v592 = vadd.f32 %v389, %v591
        %593 = vmatmul.bf16.gmra.mxu0 %v514
        %v594 = vpop.f32.mrf.mxu0
        %v595 = vadd.f32 %v389, %v594
        %v596 = vpop.f32.mrf.mxu0
        %v597 = vadd.f32 %v389, %v596
        %598 = vmatmul.bf16.gmra.mxu0 %v517
        %v599 = vpop.f32.mrf.mxu0
        %v600 = vadd.f32 %v389, %v599
        %v601 = vpop.f32.mrf.mxu0
        %v602 = vadd.f32 %v389, %v601
        %603 = vmatmul.bf16.gmra.mxu0 %v520
        %v604 = vpop.f32.mrf.mxu0
        %v605 = vadd.f32 %v389, %v604
        %v606 = vpop.f32.mrf.mxu0
        %v607 = vadd.f32 %v389, %v606
        %608 = vmatmul.bf16.gmra.mxu0 %v523
        %v609 = vpop.f32.mrf.mxu0
        %v610 = vadd.f32 %v389, %v609
        %v611 = vpop.f32.mrf.mxu0
        %v612 = vadd.f32 %v389, %v611
        %613 = vmatmul.bf16.gmra.mxu0 %v526
        %v614 = vpop.f32.mrf.mxu0
        %v615 = vadd.f32 %v389, %v614
        %v616 = vpop.f32.mrf.mxu0
        %v617 = vadd.f32 %v389, %v616
        %618 = vmatmul.bf16.gmra.mxu0 %v529
        %v619 = vpop.f32.mrf.mxu0
        %v620 = vadd.f32 %v389, %v619
        %v621 = vpop.f32.mrf.mxu0
        %v622 = vadd.f32 %v389, %v621
        %623 = vdwg.mxu0
        %v624 = vmax.f32 %v545, 0.0
        %v625 = vmax.f32 %v547, 0.0
        %v626 = vmax.f32 %v550, 0.0
        %v627 = vmax.f32 %v552, 0.0
        %v628 = vmax.f32 %v555, 0.0
        %v629 = vmax.f32 %v557, 0.0
        %v630 = vmax.f32 %v560, 0.0
        %v631 = vmax.f32 %v562, 0.0
        %v632 = vmax.f32 %v565, 0.0
        %v633 = vmax.f32 %v567, 0.0
        %v634 = vmax.f32 %v570, 0.0
        %v635 = vmax.f32 %v572, 0.0
        %v636 = vmax.f32 %v575, 0.0
        %v637 = vmax.f32 %v577, 0.0
        %v638 = vmax.f32 %v580, 0.0
        %v639 = vmax.f32 %v582, 0.0
        %v640 = vmax.f32 %v585, 0.0
        %v641 = vmax.f32 %v587, 0.0
        %v642 = vmax.f32 %v590, 0.0
        %v643 = vmax.f32 %v592, 0.0
        %v644 = vmax.f32 %v595, 0.0
        %v645 = vmax.f32 %v597, 0.0
        %v646 = vmax.f32 %v600, 0.0
        %v647 = vmax.f32 %v602, 0.0
        %v648 = vmax.f32 %v605, 0.0
        %v649 = vmax.f32 %v607, 0.0
        %v650 = vmax.f32 %v610, 0.0
        %v651 = vmax.f32 %v612, 0.0
        %v652 = vmax.f32 %v615, 0.0
        %v653 = vmax.f32 %v617, 0.0
        %v654 = vmax.f32 %v620, 0.0
        %v655 = vmax.f32 %v622, 0.0
        %vm656 = vcmask 523264
        %657 = vst.msk [vmem:[#allocation2] sm:$0xff] %vm656, %v624
        %658 = vst.msk [vmem:[#allocation2 + $0x8] sm:$0xff] %vm656, %v625
        %659 = vst.msk [vmem:[#allocation2 + $0x10] sm:$0xff] %vm656, %v626
        %660 = vst.msk [vmem:[#allocation2 + $0x18] sm:$0xff] %vm656, %v627
        %661 = vst.msk [vmem:[#allocation2 + $0x20] sm:$0xff] %vm656, %v628
        %662 = vst.msk [vmem:[#allocation2 + $0x28] sm:$0xff] %vm656, %v629
        %663 = vst.msk [vmem:[#allocation2 + $0x30] sm:$0xff] %vm656, %v630
        %664 = vst.msk [vmem:[#allocation2 + $0x38] sm:$0xff] %vm656, %v631
        %665 = vst.msk [vmem:[#allocation2 + $0x40] sm:$0xff] %vm656, %v632
        %666 = vst.msk [vmem:[#allocation2 + $0x48] sm:$0xff] %vm656, %v633
        %667 = vst.msk [vmem:[#allocation2 + $0x50] sm:$0xff] %vm656, %v634
        %668 = vst.msk [vmem:[#allocation2 + $0x58] sm:$0xff] %vm656, %v635
        %669 = vst.msk [vmem:[#allocation2 + $0x60] sm:$0xff] %vm656, %v636
        %670 = vst.msk [vmem:[#allocation2 + $0x68] sm:$0xff] %vm656, %v637
        %671 = vst.msk [vmem:[#allocation2 + $0x70] sm:$0xff] %vm656, %v638
        %672 = vst.msk [vmem:[#allocation2 + $0x78] sm:$0xff] %vm656, %v639
        %673 = vst.msk [vmem:[#allocation2 + $0x80] sm:$0xff] %vm656, %v640
        %674 = vst.msk [vmem:[#allocation2 + $0x88] sm:$0xff] %vm656, %v641
        %675 = vst.msk [vmem:[#allocation2 + $0x90] sm:$0xff] %vm656, %v642
        %676 = vst.msk [vmem:[#allocation2 + $0x98] sm:$0xff] %vm656, %v643
        %677 = vst.msk [vmem:[#allocation2 + $0xa0] sm:$0xff] %vm656, %v644
        %678 = vst.msk [vmem:[#allocation2 + $0xa8] sm:$0xff] %vm656, %v645
        %679 = vst.msk [vmem:[#allocation2 + $0xb0] sm:$0xff] %vm656, %v646
        %680 = vst.msk [vmem:[#allocation2 + $0xb8] sm:$0xff] %vm656, %v647
        %681 = vst.msk [vmem:[#allocation2 + $0xc0] sm:$0xff] %vm656, %v648
        %682 = vst.msk [vmem:[#allocation2 + $0xc8] sm:$0xff] %vm656, %v649
        %683 = vst.msk [vmem:[#allocation2 + $0xd0] sm:$0xff] %vm656, %v650
        %684 = vst.msk [vmem:[#allocation2 + $0xd8] sm:$0xff] %vm656, %v651
        %685 = vst.msk [vmem:[#allocation2 + $0xe0] sm:$0xff] %vm656, %v652
        %686 = vst.msk [vmem:[#allocation2 + $0xe8] sm:$0xff] %vm656, %v653
        %687 = vst.msk [vmem:[#allocation2 + $0xf0] sm:$0xff] %vm656, %v654
        %688 = vst.msk [vmem:[#allocation2 + $0xf8] sm:$0xff] %vm656, %v655
        %v689 = vld [vmem:[#allocation2] ss:$2 sm:$0xff]
        %s690 = scalar_lea.vmem [#allocation2], 16
        %v691 = vld [vmem:[%s690] ss:$2 sm:$0xff]
        %s692 = scalar_lea.vmem [#allocation2], 32
        %v693 = vld [vmem:[%s692] ss:$2 sm:$0xff]
        %s694 = scalar_lea.vmem [#allocation2], 48
        %v695 = vld [vmem:[%s694] ss:$2 sm:$0xff]
        %s696 = scalar_lea.vmem [#allocation2], 64
        %v697 = vld [vmem:[%s696] ss:$2 sm:$0xff]
        %s698 = scalar_lea.vmem [#allocation2], 80
        %v699 = vld [vmem:[%s698] ss:$2 sm:$0xff]
        %s700 = scalar_lea.vmem [#allocation2], 96
        %v701 = vld [vmem:[%s700] ss:$2 sm:$0xff]
        %s702 = scalar_lea.vmem [#allocation2], 112
        %v703 = vld [vmem:[%s702] ss:$2 sm:$0xff]
        %s704 = scalar_lea.vmem [#allocation2], 128
        %v705 = vld [vmem:[%s704] ss:$2 sm:$0xff]
        %s706 = scalar_lea.vmem [#allocation2], 144
        %v707 = vld [vmem:[%s706] ss:$2 sm:$0xff]
        %s708 = scalar_lea.vmem [#allocation2], 160
        %v709 = vld [vmem:[%s708] ss:$2 sm:$0xff]
        %s710 = scalar_lea.vmem [#allocation2], 176
        %v711 = vld [vmem:[%s710] ss:$2 sm:$0xff]
        %s712 = scalar_lea.vmem [#allocation2], 192
        %v713 = vld [vmem:[%s712] ss:$2 sm:$0xff]
        %s714 = scalar_lea.vmem [#allocation2], 208
        %v715 = vld [vmem:[%s714] ss:$2 sm:$0xff]
        %s716 = scalar_lea.vmem [#allocation2], 224
        %v717 = vld [vmem:[%s716] ss:$2 sm:$0xff]
        %s718 = scalar_lea.vmem [#allocation2], 240
        %v719 = vld [vmem:[%s718] ss:$2 sm:$0xff]
        %s720 = scalar_lea.vmem [#allocation2], 1
        %v721 = vld [vmem:[%s720] ss:$2 sm:$0xff]
        %s722 = scalar_lea.vmem [#allocation2], 17
        %v723 = vld [vmem:[%s722] ss:$2 sm:$0xff]
        %s724 = scalar_lea.vmem [#allocation2], 33
        %v725 = vld [vmem:[%s724] ss:$2 sm:$0xff]
        %s726 = scalar_lea.vmem [#allocation2], 49
        %v727 = vld [vmem:[%s726] ss:$2 sm:$0xff]
        %s728 = scalar_lea.vmem [#allocation2], 65
        %v729 = vld [vmem:[%s728] ss:$2 sm:$0xff]
        %s730 = scalar_lea.vmem [#allocation2], 81
        %v731 = vld [vmem:[%s730] ss:$2 sm:$0xff]
        %s732 = scalar_lea.vmem [#allocation2], 97
        %v733 = vld [vmem:[%s732] ss:$2 sm:$0xff]
        %s734 = scalar_lea.vmem [#allocation2], 113
        %v735 = vld [vmem:[%s734] ss:$2 sm:$0xff]
        %s736 = scalar_lea.vmem [#allocation2], 129
        %v737 = vld [vmem:[%s736] ss:$2 sm:$0xff]
        %s738 = scalar_lea.vmem [#allocation2], 145
        %v739 = vld [vmem:[%s738] ss:$2 sm:$0xff]
        %s740 = scalar_lea.vmem [#allocation2], 161
        %v741 = vld [vmem:[%s740] ss:$2 sm:$0xff]
        %s742 = scalar_lea.vmem [#allocation2], 177
        %v743 = vld [vmem:[%s742] ss:$2 sm:$0xff]
        %s744 = scalar_lea.vmem [#allocation2], 193
        %v745 = vld [vmem:[%s744] ss:$2 sm:$0xff]
        %s746 = scalar_lea.vmem [#allocation2], 209
        %v747 = vld [vmem:[%s746] ss:$2 sm:$0xff]
        %s748 = scalar_lea.vmem [#allocation2], 225
        %v749 = vld [vmem:[%s748] ss:$2 sm:$0xff]
        %s750 = scalar_lea.vmem [#allocation2], 241
        %v751 = vld [vmem:[%s750] ss:$2 sm:$0xff]
        %v752 = vmax.f32 %v689, %v721
        %v753 = vmax.f32 %v691, %v723
        %v754 = vmax.f32 %v693, %v725
        %v755 = vmax.f32 %v695, %v727
        %v756 = vmax.f32 %v697, %v729
        %v757 = vmax.f32 %v699, %v731
        %v758 = vmax.f32 %v701, %v733
        %v759 = vmax.f32 %v703, %v735
        %v760 = vmax.f32 %v705, %v737
        %v761 = vmax.f32 %v707, %v739
        %v762 = vmax.f32 %v709, %v741
        %v763 = vmax.f32 %v711, %v743
        %v764 = vmax.f32 %v713, %v745
        %v765 = vmax.f32 %v715, %v747
        %v766 = vmax.f32 %v717, %v749
        %v767 = vmax.f32 %v719, %v751
        %v768 = vpack.c.bf16 %v752, %v752
        %v769 = vpack.c.bf16 %v753, %v753
        %v770 = vpack.c.bf16 %v754, %v754
        %v771 = vpack.c.bf16 %v755, %v755
        %v772 = vpack.c.bf16 %v756, %v756
        %v773 = vpack.c.bf16 %v757, %v757
        %v774 = vpack.c.bf16 %v758, %v758
        %v775 = vpack.c.bf16 %v759, %v759
        %v776 = vpack.c.bf16 %v760, %v760
        %v777 = vpack.c.bf16 %v761, %v761
        %v778 = vpack.c.bf16 %v762, %v762
        %v779 = vpack.c.bf16 %v763, %v763
        %v780 = vpack.c.bf16 %v764, %v764
        %v781 = vpack.c.bf16 %v765, %v765
        %v782 = vpack.c.bf16 %v766, %v766
        %v783 = vpack.c.bf16 %v767, %v767
        %v784 = vld [vmem:[%s3] sm:$0xf]
        %v785 = vld [vmem:[%s3 + $0x4] sm:$0xf]
        %v786 = vld [vmem:[%s3 + $0x8] sm:$0xf]
        %v787 = vld [vmem:[%s3 + $0xc] sm:$0xf]
        %v788 = vld [vmem:[%s3 + $0x10] sm:$0xf]
        %v789 = vld [vmem:[%s3 + $0x14] sm:$0xf]
        %v790 = vld [vmem:[%s3 + $0x18] sm:$0xf]
        %v791 = vld [vmem:[%s3 + $0x1c] sm:$0xf]
        %s792 = scalar_lea.vmem %s3, 32
        %v793 = vld [vmem:[%s792] sm:$0xf]
        %v794 = vld [vmem:[%s792 + $0x4] sm:$0xf]
        %v795 = vld [vmem:[%s792 + $0x8] sm:$0xf]
        %v796 = vld [vmem:[%s792 + $0xc] sm:$0xf]
        %v797 = vld [vmem:[%s792 + $0x10] sm:$0xf]
        %v798 = vld [vmem:[%s792 + $0x14] sm:$0xf]
        %v799 = vld [vmem:[%s792 + $0x18] sm:$0xf]
        %v800 = vld [vmem:[%s792 + $0x1c] sm:$0xf]
        %v817 = vunpack.c.l.b16 %v768
        %v818 = vunpack.c.l.b16 %v769
        %v819 = vunpack.c.l.b16 %v770
        %v820 = vunpack.c.l.b16 %v771
        %v821 = vunpack.c.l.b16 %v772
        %v822 = vunpack.c.l.b16 %v773
        %v823 = vunpack.c.l.b16 %v774
        %v824 = vunpack.c.l.b16 %v775
        %v825 = vunpack.c.l.b16 %v776
        %v826 = vunpack.c.l.b16 %v777
        %v827 = vunpack.c.l.b16 %v778
        %v828 = vunpack.c.l.b16 %v779
        %v829 = vunpack.c.l.b16 %v780
        %v830 = vunpack.c.l.b16 %v781
        %v831 = vunpack.c.l.b16 %v782
        %v832 = vunpack.c.l.b16 %v783
        %v833 = vpack.c.b16 %v818, %v817
        %v834 = vpack.c.b16 %v820, %v819
        %v835 = vpack.c.b16 %v822, %v821
        %v836 = vpack.c.b16 %v824, %v823
        %v837 = vpack.c.b16 %v826, %v825
        %v838 = vpack.c.b16 %v828, %v827
        %v839 = vpack.c.b16 %v830, %v829
        %v840 = vpack.c.b16 %v832, %v831
        %vm841 = vsmask.f32 7424
        %v843 = vshrl.u32 %v833, 16
        %v845 = vshll.u32 %v833, 16
        %v847 = vrot.slane %v845, 1
        %v848 = vor.u32 %v843, %v847
        %v850 = vshll.u32 %v834, 16
        %v852 = vrot.slane %v850, 1
        %v853 = vsel %vm841, %v848, %v852
        %v854 = vshrl.u32 %v834, 16
        %v856 = vor.u32 %v854, %v852
        %v858 = vshll.u32 %v835, 16
        %v860 = vrot.slane %v858, 1
        %v861 = vsel %vm841, %v856, %v860
        %v862 = vshrl.u32 %v835, 16
        %v864 = vor.u32 %v862, %v860
        %v866 = vshll.u32 %v836, 16
        %v868 = vrot.slane %v866, 1
        %v869 = vsel %vm841, %v864, %v868
        %v870 = vshrl.u32 %v836, 16
        %v872 = vor.u32 %v870, %v868
        %v874 = vshll.u32 %v837, 16
        %v876 = vrot.slane %v874, 1
        %v877 = vsel %vm841, %v872, %v876
        %v878 = vshrl.u32 %v837, 16
        %v880 = vor.u32 %v878, %v876
        %v882 = vshll.u32 %v838, 16
        %v884 = vrot.slane %v882, 1
        %v885 = vsel %vm841, %v880, %v884
        %v886 = vshrl.u32 %v838, 16
        %v888 = vor.u32 %v886, %v884
        %v890 = vshll.u32 %v839, 16
        %v892 = vrot.slane %v890, 1
        %v893 = vsel %vm841, %v888, %v892
        %v894 = vshrl.u32 %v839, 16
        %v896 = vor.u32 %v894, %v892
        %v898 = vshll.u32 %v840, 16
        %v900 = vrot.slane %v898, 1
        %v901 = vsel %vm841, %v896, %v900
        %v902 = vshrl.u32 %v840, 16
        %v904 = vor.u32 %v902, %v900
        %v913 = vunpack.c.l.b16 %v793
        %v914 = vunpack.c.l.b16 %v794
        %v915 = vunpack.c.l.b16 %v795
        %v916 = vunpack.c.l.b16 %v796
        %v917 = vunpack.c.l.b16 %v797
        %v918 = vunpack.c.l.b16 %v798
        %v919 = vunpack.c.l.b16 %v799
        %v920 = vunpack.c.l.b16 %v800
        %v921 = vpack.c.b16 %v914, %v913
        %v922 = vpack.c.b16 %v916, %v915
        %v923 = vpack.c.b16 %v918, %v917
        %v924 = vpack.c.b16 %v920, %v919
        %v930 = vsel %vm656, %v853, 0
        %v933 = vsel %vm656, %v861, 0
        %v936 = vsel %vm656, %v869, 0
        %v939 = vsel %vm656, %v877, 0
        %v942 = vsel %vm656, %v885, 0
        %v945 = vsel %vm656, %v893, 0
        %v948 = vsel %vm656, %v901, 0
        %v951 = vsel %vm656, %v904, 0
        %953 = vmatpush.bf16.msra.mxu0 0
        %954 = vmatpush.bf16.msra.mxu0 0
        %955 = vmatpush.bf16.msra.mxu0 0
        %956 = vmatpush.bf16.msra.mxu0 0
        %957 = vmatpush.bf16.msra.mxu0 %v924
        %958 = vmatpush.bf16.msra.mxu0 %v923
        %959 = vmatpush.bf16.msra.mxu0 %v922
        %960 = vmatpush.bf16.msra.mxu0 %v921
        %961 = vmatmul.bf16.gmra.mxu0 %v930
        %v962 = vpop.f32.mrf.mxu0
        %v963 = vadd.f32 0.0, %v962
        %v964 = vpop.f32.mrf.mxu0
        %v965 = vadd.f32 0.0, %v964
        %966 = vmatmul.bf16.gmra.mxu0 %v933
        %v967 = vpop.f32.mrf.mxu0
        %v968 = vadd.f32 0.0, %v967
        %v969 = vpop.f32.mrf.mxu0
        %v970 = vadd.f32 0.0, %v969
        %971 = vmatmul.bf16.gmra.mxu0 %v936
        %v972 = vpop.f32.mrf.mxu0
        %v973 = vadd.f32 0.0, %v972
        %v974 = vpop.f32.mrf.mxu0
        %v975 = vadd.f32 0.0, %v974
        %976 = vmatmul.bf16.gmra.mxu0 %v939
        %v977 = vpop.f32.mrf.mxu0
        %v978 = vadd.f32 0.0, %v977
        %v979 = vpop.f32.mrf.mxu0
        %v980 = vadd.f32 0.0, %v979
        %981 = vmatmul.bf16.gmra.mxu0 %v942
        %v982 = vpop.f32.mrf.mxu0
        %v983 = vadd.f32 0.0, %v982
        %v984 = vpop.f32.mrf.mxu0
        %v985 = vadd.f32 0.0, %v984
        %986 = vmatmul.bf16.gmra.mxu0 %v945
        %v987 = vpop.f32.mrf.mxu0
        %v988 = vadd.f32 0.0, %v987
        %v989 = vpop.f32.mrf.mxu0
        %v990 = vadd.f32 0.0, %v989
        %991 = vmatmul.bf16.gmra.mxu0 %v948
        %v992 = vpop.f32.mrf.mxu0
        %v993 = vadd.f32 0.0, %v992
        %v994 = vpop.f32.mrf.mxu0
        %v995 = vadd.f32 0.0, %v994
        %996 = vmatmul.bf16.gmra.mxu0 %v951
        %v997 = vpop.f32.mrf.mxu0
        %v998 = vadd.f32 0.0, %v997
        %v999 = vpop.f32.mrf.mxu0
        %v1000 = vadd.f32 0.0, %v999
        %1001 = vdwg.mxu0
        %v1010 = vunpack.c.l.b16 %v784
        %v1011 = vunpack.c.l.b16 %v785
        %v1012 = vunpack.c.l.b16 %v786
        %v1013 = vunpack.c.l.b16 %v787
        %v1014 = vunpack.c.l.b16 %v788
        %v1015 = vunpack.c.l.b16 %v789
        %v1016 = vunpack.c.l.b16 %v790
        %v1017 = vunpack.c.l.b16 %v791
        %v1018 = vpack.c.b16 %v1011, %v1010
        %v1019 = vpack.c.b16 %v1013, %v1012
        %v1020 = vpack.c.b16 %v1015, %v1014
        %v1021 = vpack.c.b16 %v1017, %v1016
        %v1026 = vsel %vm656, %v833, 0
        %v1028 = vsel %vm656, %v834, 0
        %v1030 = vsel %vm656, %v835, 0
        %v1032 = vsel %vm656, %v836, 0
        %v1034 = vsel %vm656, %v837, 0
        %v1036 = vsel %vm656, %v838, 0
        %v1038 = vsel %vm656, %v839, 0
        %v1040 = vsel %vm656, %v840, 0
        %1042 = vmatpush.bf16.msra.mxu0 0
        %1043 = vmatpush.bf16.msra.mxu0 0
        %1044 = vmatpush.bf16.msra.mxu0 0
        %1045 = vmatpush.bf16.msra.mxu0 0
        %1046 = vmatpush.bf16.msra.mxu0 %v1021
        %1047 = vmatpush.bf16.msra.mxu0 %v1020
        %1048 = vmatpush.bf16.msra.mxu0 %v1019
        %1049 = vmatpush.bf16.msra.mxu0 %v1018
        %1050 = vmatmul.bf16.gmra.mxu0 %v1026
        %v1051 = vpop.f32.mrf.mxu0
        %v1052 = vadd.f32 %v963, %v1051
        %v1053 = vpop.f32.mrf.mxu0
        %v1054 = vadd.f32 %v965, %v1053
        %1055 = vmatmul.bf16.gmra.mxu0 %v1028
        %v1056 = vpop.f32.mrf.mxu0
        %v1057 = vadd.f32 %v968, %v1056
        %v1058 = vpop.f32.mrf.mxu0
        %v1059 = vadd.f32 %v970, %v1058
        %1060 = vmatmul.bf16.gmra.mxu0 %v1030
        %v1061 = vpop.f32.mrf.mxu0
        %v1062 = vadd.f32 %v973, %v1061
        %v1063 = vpop.f32.mrf.mxu0
        %v1064 = vadd.f32 %v975, %v1063
        %1065 = vmatmul.bf16.gmra.mxu0 %v1032
        %v1066 = vpop.f32.mrf.mxu0
        %v1067 = vadd.f32 %v978, %v1066
        %v1068 = vpop.f32.mrf.mxu0
        %v1069 = vadd.f32 %v980, %v1068
        %1070 = vmatmul.bf16.gmra.mxu0 %v1034
        %v1071 = vpop.f32.mrf.mxu0
        %v1072 = vadd.f32 %v983, %v1071
        %v1073 = vpop.f32.mrf.mxu0
        %v1074 = vadd.f32 %v985, %v1073
        %1075 = vmatmul.bf16.gmra.mxu0 %v1036
        %v1076 = vpop.f32.mrf.mxu0
        %v1077 = vadd.f32 %v988, %v1076
        %v1078 = vpop.f32.mrf.mxu0
        %v1079 = vadd.f32 %v990, %v1078
        %1080 = vmatmul.bf16.gmra.mxu0 %v1038
        %v1081 = vpop.f32.mrf.mxu0
        %v1082 = vadd.f32 %v993, %v1081
        %v1083 = vpop.f32.mrf.mxu0
        %v1084 = vadd.f32 %v995, %v1083
        %1085 = vmatmul.bf16.gmra.mxu0 %v1040
        %v1086 = vpop.f32.mrf.mxu0
        %v1087 = vadd.f32 %v998, %v1086
        %v1088 = vpop.f32.mrf.mxu0
        %v1089 = vadd.f32 %v1000, %v1088
        %1090 = vdwg.mxu0
        %s1091 = scalar_lea.vmem %s3, 64
        %v1092 = vld [vmem:[%s1091] sm:$0xf]
        %v1093 = vld [vmem:[%s1091 + $0x4] sm:$0xf]
        %v1094 = vld [vmem:[%s1091 + $0x8] sm:$0xf]
        %v1095 = vld [vmem:[%s1091 + $0xc] sm:$0xf]
        %v1096 = vld [vmem:[%s1091 + $0x10] sm:$0xf]
        %v1097 = vld [vmem:[%s1091 + $0x14] sm:$0xf]
        %v1098 = vld [vmem:[%s1091 + $0x18] sm:$0xf]
        %v1099 = vld [vmem:[%s1091 + $0x1c] sm:$0xf]
        %vm1100 = vcmask 1046528
        %v1101 = vrot.slane %v833, 1
        %v1102 = vrot.slane %v834, 1
        %v1103 = vsel %vm1100, %v1101, %v1102
        %v1104 = vrot.slane %v835, 1
        %v1105 = vsel %vm1100, %v1102, %v1104
        %v1106 = vrot.slane %v836, 1
        %v1107 = vsel %vm1100, %v1104, %v1106
        %v1108 = vrot.slane %v837, 1
        %v1109 = vsel %vm1100, %v1106, %v1108
        %v1110 = vrot.slane %v838, 1
        %v1111 = vsel %vm1100, %v1108, %v1110
        %v1112 = vrot.slane %v839, 1
        %v1113 = vsel %vm1100, %v1110, %v1112
        %v1114 = vrot.slane %v840, 1
        %v1115 = vsel %vm1100, %v1112, %v1114
        %v1124 = vunpack.c.l.b16 %v1092
        %v1125 = vunpack.c.l.b16 %v1093
        %v1126 = vunpack.c.l.b16 %v1094
        %v1127 = vunpack.c.l.b16 %v1095
        %v1128 = vunpack.c.l.b16 %v1096
        %v1129 = vunpack.c.l.b16 %v1097
        %v1130 = vunpack.c.l.b16 %v1098
        %v1131 = vunpack.c.l.b16 %v1099
        %v1132 = vpack.c.b16 %v1125, %v1124
        %v1133 = vpack.c.b16 %v1127, %v1126
        %v1134 = vpack.c.b16 %v1129, %v1128
        %v1135 = vpack.c.b16 %v1131, %v1130
        %v1141 = vsel %vm656, %v1103, 0
        %v1144 = vsel %vm656, %v1105, 0
        %v1147 = vsel %vm656, %v1107, 0
        %v1150 = vsel %vm656, %v1109, 0
        %v1153 = vsel %vm656, %v1111, 0
        %v1156 = vsel %vm656, %v1113, 0
        %v1159 = vsel %vm656, %v1115, 0
        %v1162 = vsel %vm656, %v1114, 0
        %1164 = vmatpush.bf16.msra.mxu0 0
        %1165 = vmatpush.bf16.msra.mxu0 0
        %1166 = vmatpush.bf16.msra.mxu0 0
        %1167 = vmatpush.bf16.msra.mxu0 0
        %1168 = vmatpush.bf16.msra.mxu0 %v1135
        %1169 = vmatpush.bf16.msra.mxu0 %v1134
        %1170 = vmatpush.bf16.msra.mxu0 %v1133
        %1171 = vmatpush.bf16.msra.mxu0 %v1132
        %1172 = vmatmul.bf16.gmra.mxu0 %v1141
        %v1173 = vpop.f32.mrf.mxu0
        %v1174 = vadd.f32 0.0, %v1173
        %v1175 = vpop.f32.mrf.mxu0
        %v1176 = vadd.f32 0.0, %v1175
        %1177 = vmatmul.bf16.gmra.mxu0 %v1144
        %v1178 = vpop.f32.mrf.mxu0
        %v1179 = vadd.f32 0.0, %v1178
        %v1180 = vpop.f32.mrf.mxu0
        %v1181 = vadd.f32 0.0, %v1180
        %1182 = vmatmul.bf16.gmra.mxu0 %v1147
        %v1183 = vpop.f32.mrf.mxu0
        %v1184 = vadd.f32 0.0, %v1183
        %v1185 = vpop.f32.mrf.mxu0
        %v1186 = vadd.f32 0.0, %v1185
        %1187 = vmatmul.bf16.gmra.mxu0 %v1150
        %v1188 = vpop.f32.mrf.mxu0
        %v1189 = vadd.f32 0.0, %v1188
        %v1190 = vpop.f32.mrf.mxu0
        %v1191 = vadd.f32 0.0, %v1190
        %1192 = vmatmul.bf16.gmra.mxu0 %v1153
        %v1193 = vpop.f32.mrf.mxu0
        %v1194 = vadd.f32 0.0, %v1193
        %v1195 = vpop.f32.mrf.mxu0
        %v1196 = vadd.f32 0.0, %v1195
        %1197 = vmatmul.bf16.gmra.mxu0 %v1156
        %v1198 = vpop.f32.mrf.mxu0
        %v1199 = vadd.f32 0.0, %v1198
        %v1200 = vpop.f32.mrf.mxu0
        %v1201 = vadd.f32 0.0, %v1200
        %1202 = vmatmul.bf16.gmra.mxu0 %v1159
        %v1203 = vpop.f32.mrf.mxu0
        %v1204 = vadd.f32 0.0, %v1203
        %v1205 = vpop.f32.mrf.mxu0
        %v1206 = vadd.f32 0.0, %v1205
        %1207 = vmatmul.bf16.gmra.mxu0 %v1162
        %v1208 = vpop.f32.mrf.mxu0
        %v1209 = vadd.f32 0.0, %v1208
        %v1210 = vpop.f32.mrf.mxu0
        %v1211 = vadd.f32 0.0, %v1210
        %1212 = vdwg.mxu0
        %v1213 = vadd.f32 %v1052, %v1174
        %v1214 = vadd.f32 %v1054, %v1176
        %v1215 = vadd.f32 %v1057, %v1179
        %v1216 = vadd.f32 %v1059, %v1181
        %v1217 = vadd.f32 %v1062, %v1184
        %v1218 = vadd.f32 %v1064, %v1186
        %v1219 = vadd.f32 %v1067, %v1189
        %v1220 = vadd.f32 %v1069, %v1191
        %v1221 = vadd.f32 %v1072, %v1194
        %v1222 = vadd.f32 %v1074, %v1196
        %v1223 = vadd.f32 %v1077, %v1199
        %v1224 = vadd.f32 %v1079, %v1201
        %v1225 = vadd.f32 %v1082, %v1204
        %v1226 = vadd.f32 %v1084, %v1206
        %v1227 = vadd.f32 %v1087, %v1209
        %v1228 = vadd.f32 %v1089, %v1211
        %v1229 = vld [vmem:[%s4] sm:$0x1]
        %v1231 = vperm.slane %v1229, 0
        %v1233 = vadd.f32 %v1213, %v1231
        %v1234 = vadd.f32 %v1214, %v1231
        %v1235 = vadd.f32 %v1215, %v1231
        %v1236 = vadd.f32 %v1216, %v1231
        %v1237 = vadd.f32 %v1217, %v1231
        %v1238 = vadd.f32 %v1218, %v1231
        %v1239 = vadd.f32 %v1219, %v1231
        %v1240 = vadd.f32 %v1220, %v1231
        %v1241 = vadd.f32 %v1221, %v1231
        %v1242 = vadd.f32 %v1222, %v1231
        %v1243 = vadd.f32 %v1223, %v1231
        %v1244 = vadd.f32 %v1224, %v1231
        %v1245 = vadd.f32 %v1225, %v1231
        %v1246 = vadd.f32 %v1226, %v1231
        %v1247 = vadd.f32 %v1227, %v1231
        %v1248 = vadd.f32 %v1228, %v1231
        %v1249 = vmax.f32 %v1233, 0.0
        %v1250 = vmax.f32 %v1234, 0.0
        %v1251 = vmax.f32 %v1235, 0.0
        %v1252 = vmax.f32 %v1236, 0.0
        %v1253 = vmax.f32 %v1237, 0.0
        %v1254 = vmax.f32 %v1238, 0.0
        %v1255 = vmax.f32 %v1239, 0.0
        %v1256 = vmax.f32 %v1240, 0.0
        %v1257 = vmax.f32 %v1241, 0.0
        %v1258 = vmax.f32 %v1242, 0.0
        %v1259 = vmax.f32 %v1243, 0.0
        %v1260 = vmax.f32 %v1244, 0.0
        %v1261 = vmax.f32 %v1245, 0.0
        %v1262 = vmax.f32 %v1246, 0.0
        %v1263 = vmax.f32 %v1247, 0.0
        %v1264 = vmax.f32 %v1248, 0.0
        %1265 = vst [vmem:[#allocation3] sm:$0xff] %v1249
        %1266 = vst [vmem:[#allocation3 + $0x8] sm:$0xff] %v1250
        %1267 = vst [vmem:[#allocation3 + $0x10] sm:$0xff] %v1251
        %1268 = vst [vmem:[#allocation3 + $0x18] sm:$0xff] %v1252
        %1269 = vst [vmem:[#allocation3 + $0x20] sm:$0xff] %v1253
        %1270 = vst [vmem:[#allocation3 + $0x28] sm:$0xff] %v1254
        %1271 = vst [vmem:[#allocation3 + $0x30] sm:$0xff] %v1255
        %1272 = vst [vmem:[#allocation3 + $0x38] sm:$0xff] %v1256
        %1273 = vst [vmem:[#allocation3 + $0x40] sm:$0xff] %v1257
        %1274 = vst [vmem:[#allocation3 + $0x48] sm:$0xff] %v1258
        %1275 = vst [vmem:[#allocation3 + $0x50] sm:$0xff] %v1259
        %1276 = vst [vmem:[#allocation3 + $0x58] sm:$0xff] %v1260
        %1277 = vst [vmem:[#allocation3 + $0x60] sm:$0xff] %v1261
        %1278 = vst [vmem:[#allocation3 + $0x68] sm:$0xff] %v1262
        %1279 = vst [vmem:[#allocation3 + $0x70] sm:$0xff] %v1263
        %1280 = vst [vmem:[#allocation3 + $0x78] sm:$0x3f] %v1264
        %v1281 = vld [vmem:[#allocation3] ss:$16 sm:$0x3]
        %v1282 = vld [vmem:[#allocation3] ss:$16 sm:$0xc]
        %v1283 = vor.u32 %v1281, %v1282
        %v1284 = vld [vmem:[#allocation3] ss:$16 sm:$0x30]
        %v1285 = vor.u32 %v1283, %v1284
        %v1286 = vld [vmem:[#allocation3] ss:$16 sm:$0xc0]
        %v1287 = vor.u32 %v1285, %v1286
        %s1288 = scalar_lea.vmem [#allocation3], 1
        %v1289 = vld [vmem:[%s1288] ss:$16 sm:$0x3]
        %v1290 = vld [vmem:[%s1288] ss:$16 sm:$0xc]
        %v1291 = vor.u32 %v1289, %v1290
        %v1292 = vld [vmem:[%s1288] ss:$16 sm:$0x30]
        %v1293 = vor.u32 %v1291, %v1292
        %v1294 = vld [vmem:[%s1288] ss:$16 sm:$0xc0]
        %v1295 = vor.u32 %v1293, %v1294
        %v1296 = vmax.f32 %v1287, %v1295
        %v1297 = vpack.c.bf16 %v1296, %v1296
        %s1298 = scalar_lea.vmem [#allocation3], 2
        %v1299 = vld [vmem:[%s1298] ss:$16 sm:$0x3]
        %v1300 = vld [vmem:[%s1298] ss:$16 sm:$0xc]
        %v1301 = vor.u32 %v1299, %v1300
        %v1302 = vld [vmem:[%s1298] ss:$16 sm:$0x30]
        %v1303 = vor.u32 %v1301, %v1302
        %v1304 = vld [vmem:[%s1298] ss:$16 sm:$0xc0]
        %v1305 = vor.u32 %v1303, %v1304
        %s1306 = scalar_lea.vmem [#allocation3], 3
        %v1307 = vld [vmem:[%s1306] ss:$16 sm:$0x3]
        %v1308 = vld [vmem:[%s1306] ss:$16 sm:$0xc]
        %v1309 = vor.u32 %v1307, %v1308
        %v1310 = vld [vmem:[%s1306] ss:$16 sm:$0x30]
        %v1311 = vor.u32 %v1309, %v1310
        %v1312 = vld [vmem:[%s1306] ss:$16 sm:$0xc0]
        %v1313 = vor.u32 %v1311, %v1312
        %v1314 = vmax.f32 %v1305, %v1313
        %v1315 = vpack.c.bf16 %v1314, %v1314
        %s1316 = scalar_lea.vmem [#allocation3], 4
        %v1317 = vld [vmem:[%s1316] ss:$16 sm:$0x3]
        %v1318 = vld [vmem:[%s1316] ss:$16 sm:$0xc]
        %v1319 = vor.u32 %v1317, %v1318
        %v1320 = vld [vmem:[%s1316] ss:$16 sm:$0x30]
        %v1321 = vor.u32 %v1319, %v1320
        %v1322 = vld [vmem:[%s1316] ss:$16 sm:$0xc0]
        %v1323 = vor.u32 %v1321, %v1322
        %s1324 = scalar_lea.vmem [#allocation3], 5
        %v1325 = vld [vmem:[%s1324] ss:$16 sm:$0x3]
        %v1326 = vld [vmem:[%s1324] ss:$16 sm:$0xc]
        %v1327 = vor.u32 %v1325, %v1326
        %v1328 = vld [vmem:[%s1324] ss:$16 sm:$0x30]
        %v1329 = vor.u32 %v1327, %v1328
        %v1330 = vld [vmem:[%s1324] ss:$16 sm:$0xc0]
        %v1331 = vor.u32 %v1329, %v1330
        %v1332 = vmax.f32 %v1323, %v1331
        %v1333 = vpack.c.bf16 %v1332, %v1332
        %s1334 = scalar_lea.vmem [#allocation3], 6
        %v1335 = vld [vmem:[%s1334] ss:$16 sm:$0x3]
        %v1336 = vld [vmem:[%s1334] ss:$16 sm:$0xc]
        %v1337 = vor.u32 %v1335, %v1336
        %v1338 = vld [vmem:[%s1334] ss:$16 sm:$0x30]
        %v1339 = vor.u32 %v1337, %v1338
        %v1340 = vld [vmem:[%s1334] ss:$16 sm:$0xc0]
        %v1341 = vor.u32 %v1339, %v1340
        %s1342 = scalar_lea.vmem [#allocation3], 7
        %v1343 = vld [vmem:[%s1342] ss:$16 sm:$0x3]
        %v1344 = vld [vmem:[%s1342] ss:$16 sm:$0xc]
        %v1345 = vor.u32 %v1343, %v1344
        %v1346 = vld [vmem:[%s1342] ss:$16 sm:$0x30]
        %v1347 = vor.u32 %v1345, %v1346
        %v1348 = vld [vmem:[%s1342] ss:$16 sm:$0xc0]
        %v1349 = vor.u32 %v1347, %v1348
        %v1350 = vmax.f32 %v1341, %v1349
        %v1351 = vpack.c.bf16 %v1350, %v1350
        %s1352 = scalar_lea.vmem [#allocation3], 8
        %v1353 = vld [vmem:[%s1352] ss:$16 sm:$0x3]
        %v1354 = vld [vmem:[%s1352] ss:$16 sm:$0xc]
        %v1355 = vor.u32 %v1353, %v1354
        %v1356 = vld [vmem:[%s1352] ss:$16 sm:$0x30]
        %v1357 = vor.u32 %v1355, %v1356
        %v1358 = vld [vmem:[%s1352] ss:$16 sm:$0xc0]
        %v1359 = vor.u32 %v1357, %v1358
        %s1360 = scalar_lea.vmem [#allocation3], 9
        %v1361 = vld [vmem:[%s1360] ss:$16 sm:$0x3]
        %v1362 = vld [vmem:[%s1360] ss:$16 sm:$0xc]
        %v1363 = vor.u32 %v1361, %v1362
        %v1364 = vld [vmem:[%s1360] ss:$16 sm:$0x30]
        %v1365 = vor.u32 %v1363, %v1364
        %v1366 = vld [vmem:[%s1360] ss:$16 sm:$0xc0]
        %v1367 = vor.u32 %v1365, %v1366
        %v1368 = vmax.f32 %v1359, %v1367
        %v1369 = vpack.c.bf16 %v1368, %v1368
        %s1370 = scalar_lea.vmem [#allocation3], 10
        %v1371 = vld [vmem:[%s1370] ss:$16 sm:$0x3]
        %v1372 = vld [vmem:[%s1370] ss:$16 sm:$0xc]
        %v1373 = vor.u32 %v1371, %v1372
        %v1374 = vld [vmem:[%s1370] ss:$16 sm:$0x30]
        %v1375 = vor.u32 %v1373, %v1374
        %v1376 = vld [vmem:[%s1370] ss:$16 sm:$0xc0]
        %v1377 = vor.u32 %v1375, %v1376
        %s1378 = scalar_lea.vmem [#allocation3], 11
        %v1379 = vld [vmem:[%s1378] ss:$16 sm:$0x3]
        %v1380 = vld [vmem:[%s1378] ss:$16 sm:$0xc]
        %v1381 = vor.u32 %v1379, %v1380
        %v1382 = vld [vmem:[%s1378] ss:$16 sm:$0x30]
        %v1383 = vor.u32 %v1381, %v1382
        %v1384 = vld [vmem:[%s1378] ss:$16 sm:$0xc0]
        %v1385 = vor.u32 %v1383, %v1384
        %v1386 = vmax.f32 %v1377, %v1385
        %v1387 = vpack.c.bf16 %v1386, %v1386
        %s1388 = scalar_lea.vmem [#allocation3], 12
        %v1389 = vld [vmem:[%s1388] ss:$16 sm:$0x3]
        %v1390 = vld [vmem:[%s1388] ss:$16 sm:$0xc]
        %v1391 = vor.u32 %v1389, %v1390
        %v1392 = vld [vmem:[%s1388] ss:$16 sm:$0x30]
        %v1393 = vor.u32 %v1391, %v1392
        %v1394 = vld [vmem:[%s1388] ss:$16 sm:$0xc0]
        %v1395 = vor.u32 %v1393, %v1394
        %s1396 = scalar_lea.vmem [#allocation3], 13
        %v1397 = vld [vmem:[%s1396] ss:$16 sm:$0x3]
        %v1398 = vld [vmem:[%s1396] ss:$16 sm:$0xc]
        %v1399 = vor.u32 %v1397, %v1398
        %v1400 = vld [vmem:[%s1396] ss:$16 sm:$0x30]
        %v1401 = vor.u32 %v1399, %v1400
        %v1402 = vld [vmem:[%s1396] ss:$16 sm:$0xc0]
        %v1403 = vor.u32 %v1401, %v1402
        %v1404 = vmax.f32 %v1395, %v1403
        %v1405 = vpack.c.bf16 %v1404, %v1404
        %v1406 = vld [vmem:[#allocation4] sm:$0xff]
        %v1407 = vld [vmem:[#allocation4 + $0x8] sm:$0xff]
        %v1408 = vld [vmem:[#allocation4 + $0x10] sm:$0xff]
        %v1409 = vld [vmem:[#allocation4 + $0x18] sm:$0xff]
        %v1410 = vld [vmem:[#allocation4 + $0x20] sm:$0xff]
        %v1411 = vld [vmem:[#allocation4 + $0x28] sm:$0xff]
        %v1412 = vld [vmem:[#allocation4 + $0x30] sm:$0xff]
        %v1413 = vld [vmem:[#allocation4 + $0x38] sm:$0xff]
        %v1414 = vld [vmem:[#allocation4 + $0x40] sm:$0xff]
        %v1415 = vld [vmem:[#allocation4 + $0x48] sm:$0xff]
        %v1416 = vld [vmem:[#allocation4 + $0x50] sm:$0xff]
        %v1417 = vld [vmem:[#allocation4 + $0x58] sm:$0xff]
        %v1418 = vld [vmem:[#allocation4 + $0x60] sm:$0xff]
        %v1419 = vld [vmem:[#allocation4 + $0x68] sm:$0xff]
        %v1420 = vld [vmem:[#allocation4 + $0x70] sm:$0xff]
        %v1421 = vld [vmem:[#allocation4 + $0x78] sm:$0xff]
        %v1422 = vld [vmem:[#allocation4 + $0x80] sm:$0xff]
        %v1423 = vld [vmem:[#allocation4 + $0x88] sm:$0xff]
        %v1424 = vld [vmem:[#allocation4 + $0x90] sm:$0xff]
        %v1425 = vld [vmem:[#allocation4 + $0x98] sm:$0xff]
        %v1426 = vld [vmem:[#allocation4 + $0xa0] sm:$0xff]
        %v1427 = vld [vmem:[#allocation4 + $0xa8] sm:$0xff]
        %v1428 = vld [vmem:[#allocation4 + $0xb0] sm:$0xff]
        %v1429 = vld [vmem:[#allocation4 + $0xb8] sm:$0xff]
        %v1430 = vld [vmem:[#allocation4 + $0xc0] sm:$0xff]
        %v1431 = vld [vmem:[#allocation4 + $0xc8] sm:$0xff]
        %v1432 = vld [vmem:[#allocation4 + $0xd0] sm:$0xff]
        %v1433 = vld [vmem:[#allocation4 + $0xd8] sm:$0xff]
        %v1434 = vld [vmem:[#allocation4 + $0xe0] sm:$0xff]
        %v1435 = vld [vmem:[#allocation4 + $0xe8] sm:$0xff]
        %v1436 = vld [vmem:[#allocation4 + $0xf0] sm:$0xff]
        %v1437 = vld [vmem:[#allocation4 + $0xf8] sm:$0xff]
        %v1438 = vld [vmem:[#allocation4 + $0x100] sm:$0xff]
        %v1439 = vld [vmem:[#allocation4 + $0x108] sm:$0xff]
        %v1440 = vld [vmem:[#allocation4 + $0x110] sm:$0xff]
        %v1441 = vld [vmem:[#allocation4 + $0x118] sm:$0xff]
        %v1442 = vld [vmem:[#allocation4 + $0x120] sm:$0xff]
        %v1443 = vld [vmem:[#allocation4 + $0x128] sm:$0xff]
        %v1444 = vld [vmem:[#allocation4 + $0x130] sm:$0xff]
        %v1445 = vld [vmem:[#allocation4 + $0x138] sm:$0xff]
        %v1446 = vld [vmem:[#allocation4 + $0x140] sm:$0xff]
        %v1447 = vld [vmem:[#allocation4 + $0x148] sm:$0xff]
        %v1448 = vld [vmem:[#allocation4 + $0x150] sm:$0xff]
        %v1449 = vld [vmem:[#allocation4 + $0x158] sm:$0xff]
        %v1450 = vld [vmem:[#allocation4 + $0x160] sm:$0xff]
        %v1451 = vld [vmem:[#allocation4 + $0x168] sm:$0xff]
        %v1452 = vld [vmem:[#allocation4 + $0x170] sm:$0xff]
        %v1453 = vld [vmem:[#allocation4 + $0x178] sm:$0xff]
        %v1454 = vld [vmem:[#allocation4 + $0x180] sm:$0xff]
        %v1455 = vld [vmem:[#allocation4 + $0x188] sm:$0xff]
        %v1456 = vld [vmem:[#allocation4 + $0x190] sm:$0xff]
        %v1457 = vld [vmem:[#allocation4 + $0x198] sm:$0xff]
        %v1458 = vld [vmem:[#allocation4 + $0x1a0] sm:$0xff]
        %v1459 = vld [vmem:[#allocation4 + $0x1a8] sm:$0xff]
        %v1460 = vld [vmem:[#allocation4 + $0x1b0] sm:$0xff]
        %v1461 = vld [vmem:[#allocation4 + $0x1b8] sm:$0xff]
        %v1462 = vld [vmem:[#allocation4 + $0x1c0] sm:$0xff]
        %v1463 = vld [vmem:[#allocation4 + $0x1c8] sm:$0xff]
        %v1464 = vld [vmem:[#allocation4 + $0x1d0] sm:$0xff]
        %v1465 = vld [vmem:[#allocation4 + $0x1d8] sm:$0xff]
        %v1466 = vld [vmem:[#allocation4 + $0x1e0] sm:$0xff]
        %v1467 = vld [vmem:[#allocation4 + $0x1e8] sm:$0xff]
        %v1468 = vld [vmem:[#allocation4 + $0x1f0] sm:$0xff]
        %v1469 = vld [vmem:[#allocation4 + $0x1f8] sm:$0xff]
        %v1470 = vld [vmem:[#allocation4 + $0x200] sm:$0xff]
        %v1471 = vld [vmem:[#allocation4 + $0x208] sm:$0xff]
        %v1472 = vld [vmem:[#allocation4 + $0x210] sm:$0xff]
        %v1473 = vld [vmem:[#allocation4 + $0x218] sm:$0xff]
        %v1474 = vld [vmem:[#allocation4 + $0x220] sm:$0xff]
        %v1475 = vld [vmem:[#allocation4 + $0x228] sm:$0xff]
        %v1476 = vld [vmem:[#allocation4 + $0x230] sm:$0xff]
        %v1477 = vld [vmem:[#allocation4 + $0x238] sm:$0xff]
        %v1478 = vld [vmem:[#allocation4 + $0x240] sm:$0xff]
        %v1479 = vld [vmem:[#allocation4 + $0x248] sm:$0xff]
        %v1480 = vld [vmem:[#allocation4 + $0x250] sm:$0xff]
        %v1481 = vld [vmem:[#allocation4 + $0x258] sm:$0xff]
        %v1482 = vld [vmem:[#allocation4 + $0x260] sm:$0xff]
        %v1483 = vld [vmem:[#allocation4 + $0x268] sm:$0xff]
        %v1484 = vld [vmem:[#allocation4 + $0x270] sm:$0xff]
        %v1485 = vld [vmem:[#allocation4 + $0x278] sm:$0xff]
        %v1486 = vld [vmem:[#allocation4 + $0x280] sm:$0xff]
        %v1487 = vld [vmem:[#allocation4 + $0x288] sm:$0xff]
        %v1488 = vld [vmem:[#allocation4 + $0x290] sm:$0xff]
        %v1489 = vld [vmem:[#allocation4 + $0x298] sm:$0xff]
        %v1490 = vld [vmem:[#allocation4 + $0x2a0] sm:$0xff]
        %v1491 = vld [vmem:[#allocation4 + $0x2a8] sm:$0xff]
        %v1492 = vld [vmem:[#allocation4 + $0x2b0] sm:$0xff]
        %v1493 = vld [vmem:[#allocation4 + $0x2b8] sm:$0xff]
        %v1494 = vld [vmem:[#allocation4 + $0x2c0] sm:$0xff]
        %v1495 = vld [vmem:[#allocation4 + $0x2c8] sm:$0xff]
        %v1496 = vld [vmem:[#allocation4 + $0x2d0] sm:$0xff]
        %v1497 = vld [vmem:[#allocation4 + $0x2d8] sm:$0xff]
        %v1498 = vld [vmem:[#allocation4 + $0x2e0] sm:$0xff]
        %v1499 = vld [vmem:[#allocation4 + $0x2e8] sm:$0xff]
        %v1500 = vld [vmem:[#allocation4 + $0x2f0] sm:$0xff]
        %v1501 = vld [vmem:[#allocation4 + $0x2f8] sm:$0xff]
        %v1502 = vld [vmem:[#allocation4 + $0x300] sm:$0xff]
        %v1503 = vld [vmem:[#allocation4 + $0x308] sm:$0xff]
        %v1504 = vld [vmem:[#allocation4 + $0x310] sm:$0xff]
        %v1505 = vld [vmem:[#allocation4 + $0x318] sm:$0xff]
        %v1506 = vld [vmem:[#allocation4 + $0x320] sm:$0xff]
        %v1507 = vld [vmem:[#allocation4 + $0x328] sm:$0xff]
        %v1508 = vld [vmem:[#allocation4 + $0x330] sm:$0xff]
        %v1509 = vld [vmem:[#allocation4 + $0x338] sm:$0xff]
        %v1510 = vld [vmem:[#allocation4 + $0x340] sm:$0xff]
        %v1511 = vld [vmem:[#allocation4 + $0x348] sm:$0xff]
        %v1512 = vld [vmem:[#allocation4 + $0x350] sm:$0xff]
        %v1513 = vld [vmem:[#allocation4 + $0x358] sm:$0xff]
        %v1514 = vld [vmem:[#allocation4 + $0x360] sm:$0xff]
        %v1515 = vld [vmem:[#allocation4 + $0x368] sm:$0xff]
        %v1516 = vld [vmem:[#allocation4 + $0x370] sm:$0xff]
        %v1517 = vld [vmem:[#allocation4 + $0x378] sm:$0xff]
        %v1518 = vld [vmem:[%s6] sm:$0x3]
        %v1520 = vperm.slane %v1518, 0
        %v1521 = vperm.slane %v1518, 1
        %v1636 = vunpack.c.l.b16 %v1406
        %v1637 = vunpack.c.h.b16 %v1406
        %v1638 = vunpack.c.l.b16 %v1407
        %v1639 = vunpack.c.h.b16 %v1407
        %v1640 = vunpack.c.l.b16 %v1408
        %v1641 = vunpack.c.h.b16 %v1408
        %v1642 = vunpack.c.l.b16 %v1409
        %v1643 = vunpack.c.h.b16 %v1409
        %v1644 = vunpack.c.l.b16 %v1410
        %v1645 = vunpack.c.h.b16 %v1410
        %v1646 = vunpack.c.l.b16 %v1411
        %v1647 = vunpack.c.h.b16 %v1411
        %v1648 = vunpack.c.l.b16 %v1412
        %v1649 = vunpack.c.h.b16 %v1412
        %v1650 = vunpack.c.l.b16 %v1413
        %v1651 = vunpack.c.h.b16 %v1413
        %v1652 = vunpack.c.l.b16 %v1414
        %v1653 = vunpack.c.h.b16 %v1414
        %v1654 = vunpack.c.l.b16 %v1415
        %v1655 = vunpack.c.h.b16 %v1415
        %v1656 = vunpack.c.l.b16 %v1416
        %v1657 = vunpack.c.h.b16 %v1416
        %v1658 = vunpack.c.l.b16 %v1417
        %v1659 = vunpack.c.h.b16 %v1417
        %v1660 = vunpack.c.l.b16 %v1418
        %v1661 = vunpack.c.h.b16 %v1418
        %v1662 = vunpack.c.l.b16 %v1419
        %v1663 = vunpack.c.h.b16 %v1419
        %v1664 = vunpack.c.l.b16 %v1420
        %v1665 = vunpack.c.h.b16 %v1420
        %v1666 = vunpack.c.l.b16 %v1421
        %v1667 = vunpack.c.h.b16 %v1421
        %v1668 = vunpack.c.l.b16 %v1422
        %v1669 = vunpack.c.h.b16 %v1422
        %v1670 = vunpack.c.l.b16 %v1423
        %v1671 = vunpack.c.h.b16 %v1423
        %v1672 = vunpack.c.l.b16 %v1424
        %v1673 = vunpack.c.h.b16 %v1424
        %v1674 = vunpack.c.l.b16 %v1425
        %v1675 = vunpack.c.h.b16 %v1425
        %v1676 = vunpack.c.l.b16 %v1426
        %v1677 = vunpack.c.h.b16 %v1426
        %v1678 = vunpack.c.l.b16 %v1427
        %v1679 = vunpack.c.h.b16 %v1427
        %v1680 = vunpack.c.l.b16 %v1428
        %v1681 = vunpack.c.h.b16 %v1428
        %v1682 = vunpack.c.l.b16 %v1429
        %v1683 = vunpack.c.h.b16 %v1429
        %v1684 = vunpack.c.l.b16 %v1430
        %v1685 = vunpack.c.h.b16 %v1430
        %v1686 = vunpack.c.l.b16 %v1431
        %v1687 = vunpack.c.h.b16 %v1431
        %v1688 = vunpack.c.l.b16 %v1432
        %v1689 = vunpack.c.h.b16 %v1432
        %v1690 = vunpack.c.l.b16 %v1433
        %v1691 = vunpack.c.h.b16 %v1433
        %v1692 = vunpack.c.l.b16 %v1434
        %v1693 = vunpack.c.h.b16 %v1434
        %v1694 = vunpack.c.l.b16 %v1435
        %v1695 = vunpack.c.h.b16 %v1435
        %v1696 = vunpack.c.l.b16 %v1436
        %v1697 = vunpack.c.h.b16 %v1436
        %v1698 = vunpack.c.l.b16 %v1437
        %v1699 = vunpack.c.h.b16 %v1437
        %v1700 = vunpack.c.l.b16 %v1438
        %v1701 = vunpack.c.h.b16 %v1438
        %v1702 = vunpack.c.l.b16 %v1439
        %v1703 = vunpack.c.h.b16 %v1439
        %v1704 = vunpack.c.l.b16 %v1440
        %v1705 = vunpack.c.h.b16 %v1440
        %v1706 = vunpack.c.l.b16 %v1441
        %v1707 = vunpack.c.h.b16 %v1441
        %v1708 = vunpack.c.l.b16 %v1442
        %v1709 = vunpack.c.h.b16 %v1442
        %v1710 = vunpack.c.l.b16 %v1443
        %v1711 = vunpack.c.h.b16 %v1443
        %v1712 = vunpack.c.l.b16 %v1444
        %v1713 = vunpack.c.h.b16 %v1444
        %v1714 = vunpack.c.l.b16 %v1445
        %v1715 = vunpack.c.h.b16 %v1445
        %v1716 = vunpack.c.l.b16 %v1446
        %v1717 = vunpack.c.h.b16 %v1446
        %v1718 = vunpack.c.l.b16 %v1447
        %v1719 = vunpack.c.h.b16 %v1447
        %v1720 = vunpack.c.l.b16 %v1448
        %v1721 = vunpack.c.h.b16 %v1448
        %v1722 = vunpack.c.l.b16 %v1449
        %v1723 = vunpack.c.h.b16 %v1449
        %v1724 = vunpack.c.l.b16 %v1450
        %v1725 = vunpack.c.h.b16 %v1450
        %v1726 = vunpack.c.l.b16 %v1451
        %v1727 = vunpack.c.h.b16 %v1451
        %v1728 = vunpack.c.l.b16 %v1452
        %v1729 = vunpack.c.h.b16 %v1452
        %v1730 = vunpack.c.l.b16 %v1453
        %v1731 = vunpack.c.h.b16 %v1453
        %v1732 = vunpack.c.l.b16 %v1454
        %v1733 = vunpack.c.h.b16 %v1454
        %v1734 = vunpack.c.l.b16 %v1455
        %v1735 = vunpack.c.h.b16 %v1455
        %v1736 = vunpack.c.l.b16 %v1456
        %v1737 = vunpack.c.h.b16 %v1456
        %v1738 = vunpack.c.l.b16 %v1457
        %v1739 = vunpack.c.h.b16 %v1457
        %v1740 = vunpack.c.l.b16 %v1458
        %v1741 = vunpack.c.h.b16 %v1458
        %v1742 = vunpack.c.l.b16 %v1459
        %v1743 = vunpack.c.h.b16 %v1459
        %v1744 = vunpack.c.l.b16 %v1460
        %v1745 = vunpack.c.h.b16 %v1460
        %v1746 = vunpack.c.l.b16 %v1461
        %v1747 = vunpack.c.h.b16 %v1461
        %v1748 = vunpack.c.l.b16 %v1462
        %v1749 = vunpack.c.h.b16 %v1462
        %v1750 = vunpack.c.l.b16 %v1463
        %v1751 = vunpack.c.h.b16 %v1463
        %v1752 = vunpack.c.l.b16 %v1464
        %v1753 = vunpack.c.h.b16 %v1464
        %v1754 = vunpack.c.l.b16 %v1465
        %v1755 = vunpack.c.h.b16 %v1465
        %v1756 = vunpack.c.l.b16 %v1466
        %v1757 = vunpack.c.h.b16 %v1466
        %v1758 = vunpack.c.l.b16 %v1467
        %v1759 = vunpack.c.h.b16 %v1467
        %v1760 = vunpack.c.l.b16 %v1468
        %v1761 = vunpack.c.h.b16 %v1468
        %v1762 = vunpack.c.l.b16 %v1469
        %v1763 = vunpack.c.h.b16 %v1469
        %v1764 = vunpack.c.l.b16 %v1470
        %v1765 = vunpack.c.h.b16 %v1470
        %v1766 = vunpack.c.l.b16 %v1471
        %v1767 = vunpack.c.h.b16 %v1471
        %v1768 = vunpack.c.l.b16 %v1472
        %v1769 = vunpack.c.h.b16 %v1472
        %v1770 = vunpack.c.l.b16 %v1473
        %v1771 = vunpack.c.h.b16 %v1473
        %v1772 = vunpack.c.l.b16 %v1474
        %v1773 = vunpack.c.h.b16 %v1474
        %v1774 = vunpack.c.l.b16 %v1475
        %v1775 = vunpack.c.h.b16 %v1475
        %v1776 = vunpack.c.l.b16 %v1476
        %v1777 = vunpack.c.h.b16 %v1476
        %v1778 = vunpack.c.l.b16 %v1477
        %v1779 = vunpack.c.h.b16 %v1477
        %v1780 = vunpack.c.l.b16 %v1478
        %v1781 = vunpack.c.h.b16 %v1478
        %v1782 = vunpack.c.l.b16 %v1479
        %v1783 = vunpack.c.h.b16 %v1479
        %v1784 = vunpack.c.l.b16 %v1480
        %v1785 = vunpack.c.h.b16 %v1480
        %v1786 = vunpack.c.l.b16 %v1481
        %v1787 = vunpack.c.h.b16 %v1481
        %v1788 = vunpack.c.l.b16 %v1482
        %v1789 = vunpack.c.h.b16 %v1482
        %v1790 = vunpack.c.l.b16 %v1483
        %v1791 = vunpack.c.h.b16 %v1483
        %v1792 = vunpack.c.l.b16 %v1484
        %v1793 = vunpack.c.h.b16 %v1484
        %v1794 = vunpack.c.l.b16 %v1485
        %v1795 = vunpack.c.h.b16 %v1485
        %v1796 = vunpack.c.l.b16 %v1486
        %v1797 = vunpack.c.h.b16 %v1486
        %v1798 = vunpack.c.l.b16 %v1487
        %v1799 = vunpack.c.h.b16 %v1487
        %v1800 = vunpack.c.l.b16 %v1488
        %v1801 = vunpack.c.h.b16 %v1488
        %v1802 = vunpack.c.l.b16 %v1489
        %v1803 = vunpack.c.h.b16 %v1489
        %v1804 = vunpack.c.l.b16 %v1490
        %v1805 = vunpack.c.h.b16 %v1490
        %v1806 = vunpack.c.l.b16 %v1491
        %v1807 = vunpack.c.h.b16 %v1491
        %v1808 = vunpack.c.l.b16 %v1492
        %v1809 = vunpack.c.h.b16 %v1492
        %v1810 = vunpack.c.l.b16 %v1493
        %v1811 = vunpack.c.h.b16 %v1493
        %v1812 = vunpack.c.l.b16 %v1494
        %v1813 = vunpack.c.h.b16 %v1494
        %v1814 = vunpack.c.l.b16 %v1495
        %v1815 = vunpack.c.h.b16 %v1495
        %v1816 = vunpack.c.l.b16 %v1496
        %v1817 = vunpack.c.h.b16 %v1496
        %v1818 = vunpack.c.l.b16 %v1497
        %v1819 = vunpack.c.h.b16 %v1497
        %v1820 = vunpack.c.l.b16 %v1498
        %v1821 = vunpack.c.h.b16 %v1498
        %v1822 = vunpack.c.l.b16 %v1499
        %v1823 = vunpack.c.h.b16 %v1499
        %v1824 = vunpack.c.l.b16 %v1500
        %v1825 = vunpack.c.h.b16 %v1500
        %v1826 = vunpack.c.l.b16 %v1501
        %v1827 = vunpack.c.h.b16 %v1501
        %v1828 = vunpack.c.l.b16 %v1502
        %v1829 = vunpack.c.h.b16 %v1502
        %v1830 = vunpack.c.l.b16 %v1503
        %v1831 = vunpack.c.h.b16 %v1503
        %v1832 = vunpack.c.l.b16 %v1504
        %v1833 = vunpack.c.h.b16 %v1504
        %v1834 = vunpack.c.l.b16 %v1505
        %v1835 = vunpack.c.h.b16 %v1505
        %v1836 = vunpack.c.l.b16 %v1506
        %v1837 = vunpack.c.h.b16 %v1506
        %v1838 = vunpack.c.l.b16 %v1507
        %v1839 = vunpack.c.h.b16 %v1507
        %v1840 = vunpack.c.l.b16 %v1508
        %v1841 = vunpack.c.h.b16 %v1508
        %v1842 = vunpack.c.l.b16 %v1509
        %v1843 = vunpack.c.h.b16 %v1509
        %v1844 = vunpack.c.l.b16 %v1510
        %v1845 = vunpack.c.h.b16 %v1510
        %v1846 = vunpack.c.l.b16 %v1511
        %v1847 = vunpack.c.h.b16 %v1511
        %v1848 = vunpack.c.l.b16 %v1512
        %v1849 = vunpack.c.h.b16 %v1512
        %v1850 = vunpack.c.l.b16 %v1513
        %v1851 = vunpack.c.h.b16 %v1513
        %v1852 = vunpack.c.l.b16 %v1514
        %v1853 = vunpack.c.h.b16 %v1514
        %v1854 = vunpack.c.l.b16 %v1515
        %v1855 = vunpack.c.h.b16 %v1515
        %v1856 = vunpack.c.l.b16 %v1516
        %v1857 = vunpack.c.h.b16 %v1516
        %v1858 = vunpack.c.l.b16 %v1517
        %v1859 = vunpack.c.h.b16 %v1517
        %v1860 = vpack.c.b16 %v1638, %v1636
        %v1861 = vpack.c.b16 %v1639, %v1637
        %v1862 = vpack.c.b16 %v1642, %v1640
        %v1863 = vpack.c.b16 %v1643, %v1641
        %v1864 = vpack.c.b16 %v1646, %v1644
        %v1865 = vpack.c.b16 %v1647, %v1645
        %v1866 = vpack.c.b16 %v1650, %v1648
        %v1867 = vpack.c.b16 %v1651, %v1649
        %v1868 = vpack.c.b16 %v1654, %v1652
        %v1869 = vpack.c.b16 %v1655, %v1653
        %v1870 = vpack.c.b16 %v1658, %v1656
        %v1871 = vpack.c.b16 %v1659, %v1657
        %v1872 = vpack.c.b16 %v1662, %v1660
        %v1873 = vpack.c.b16 %v1663, %v1661
        %v1874 = vpack.c.b16 %v1666, %v1664
        %v1875 = vpack.c.b16 %v1667, %v1665
        %v1876 = vpack.c.b16 %v1670, %v1668
        %v1877 = vpack.c.b16 %v1671, %v1669
        %v1878 = vpack.c.b16 %v1674, %v1672
        %v1879 = vpack.c.b16 %v1675, %v1673
        %v1880 = vpack.c.b16 %v1678, %v1676
        %v1881 = vpack.c.b16 %v1679, %v1677
        %v1882 = vpack.c.b16 %v1682, %v1680
        %v1883 = vpack.c.b16 %v1683, %v1681
        %v1884 = vpack.c.b16 %v1686, %v1684
        %v1885 = vpack.c.b16 %v1687, %v1685
        %v1886 = vpack.c.b16 %v1690, %v1688
        %v1887 = vpack.c.b16 %v1691, %v1689
        %v1888 = vpack.c.b16 %v1694, %v1692
        %v1889 = vpack.c.b16 %v1695, %v1693
        %v1890 = vpack.c.b16 %v1698, %v1696
        %v1891 = vpack.c.b16 %v1699, %v1697
        %v1892 = vpack.c.b16 %v1702, %v1700
        %v1893 = vpack.c.b16 %v1703, %v1701
        %v1894 = vpack.c.b16 %v1706, %v1704
        %v1895 = vpack.c.b16 %v1707, %v1705
        %v1896 = vpack.c.b16 %v1710, %v1708
        %v1897 = vpack.c.b16 %v1711, %v1709
        %v1898 = vpack.c.b16 %v1714, %v1712
        %v1899 = vpack.c.b16 %v1715, %v1713
        %v1900 = vpack.c.b16 %v1718, %v1716
        %v1901 = vpack.c.b16 %v1719, %v1717
        %v1902 = vpack.c.b16 %v1722, %v1720
        %v1903 = vpack.c.b16 %v1723, %v1721
        %v1904 = vpack.c.b16 %v1726, %v1724
        %v1905 = vpack.c.b16 %v1727, %v1725
        %v1906 = vpack.c.b16 %v1730, %v1728
        %v1907 = vpack.c.b16 %v1731, %v1729
        %v1908 = vpack.c.b16 %v1734, %v1732
        %v1909 = vpack.c.b16 %v1735, %v1733
        %v1910 = vpack.c.b16 %v1738, %v1736
        %v1911 = vpack.c.b16 %v1739, %v1737
        %v1912 = vpack.c.b16 %v1742, %v1740
        %v1913 = vpack.c.b16 %v1743, %v1741
        %v1914 = vpack.c.b16 %v1746, %v1744
        %v1915 = vpack.c.b16 %v1747, %v1745
        %v1916 = vpack.c.b16 %v1750, %v1748
        %v1917 = vpack.c.b16 %v1751, %v1749
        %v1918 = vpack.c.b16 %v1754, %v1752
        %v1919 = vpack.c.b16 %v1755, %v1753
        %v1920 = vpack.c.b16 %v1758, %v1756
        %v1921 = vpack.c.b16 %v1759, %v1757
        %v1922 = vpack.c.b16 %v1762, %v1760
        %v1923 = vpack.c.b16 %v1763, %v1761
        %v1924 = vpack.c.b16 %v1766, %v1764
        %v1925 = vpack.c.b16 %v1767, %v1765
        %v1926 = vpack.c.b16 %v1770, %v1768
        %v1927 = vpack.c.b16 %v1771, %v1769
        %v1928 = vpack.c.b16 %v1774, %v1772
        %v1929 = vpack.c.b16 %v1775, %v1773
        %v1930 = vpack.c.b16 %v1778, %v1776
        %v1931 = vpack.c.b16 %v1779, %v1777
        %v1932 = vpack.c.b16 %v1782, %v1780
        %v1933 = vpack.c.b16 %v1783, %v1781
        %v1934 = vpack.c.b16 %v1786, %v1784
        %v1935 = vpack.c.b16 %v1787, %v1785
        %v1936 = vpack.c.b16 %v1790, %v1788
        %v1937 = vpack.c.b16 %v1791, %v1789
        %v1938 = vpack.c.b16 %v1794, %v1792
        %v1939 = vpack.c.b16 %v1795, %v1793
        %v1940 = vpack.c.b16 %v1798, %v1796
        %v1941 = vpack.c.b16 %v1799, %v1797
        %v1942 = vpack.c.b16 %v1802, %v1800
        %v1943 = vpack.c.b16 %v1803, %v1801
        %v1944 = vpack.c.b16 %v1806, %v1804
        %v1945 = vpack.c.b16 %v1807, %v1805
        %v1946 = vpack.c.b16 %v1810, %v1808
        %v1947 = vpack.c.b16 %v1811, %v1809
        %v1948 = vpack.c.b16 %v1814, %v1812
        %v1949 = vpack.c.b16 %v1815, %v1813
        %v1950 = vpack.c.b16 %v1818, %v1816
        %v1951 = vpack.c.b16 %v1819, %v1817
        %v1952 = vpack.c.b16 %v1822, %v1820
        %v1953 = vpack.c.b16 %v1823, %v1821
        %v1954 = vpack.c.b16 %v1826, %v1824
        %v1955 = vpack.c.b16 %v1827, %v1825
        %v1956 = vpack.c.b16 %v1830, %v1828
        %v1957 = vpack.c.b16 %v1831, %v1829
        %v1958 = vpack.c.b16 %v1834, %v1832
        %v1959 = vpack.c.b16 %v1835, %v1833
        %v1960 = vpack.c.b16 %v1838, %v1836
        %v1961 = vpack.c.b16 %v1839, %v1837
        %v1962 = vpack.c.b16 %v1842, %v1840
        %v1963 = vpack.c.b16 %v1843, %v1841
        %v1964 = vpack.c.b16 %v1846, %v1844
        %v1965 = vpack.c.b16 %v1847, %v1845
        %v1966 = vpack.c.b16 %v1850, %v1848
        %v1967 = vpack.c.b16 %v1851, %v1849
        %v1968 = vpack.c.b16 %v1854, %v1852
        %v1969 = vpack.c.b16 %v1855, %v1853
        %v1970 = vpack.c.b16 %v1858, %v1856
        %v1971 = vpack.c.b16 %v1859, %v1857
        %2084 = vmatpush.bf16.msra.mxu0 %v1874
        %2085 = vmatpush.bf16.msra.mxu0 %v1872
        %2086 = vmatpush.bf16.msra.mxu0 %v1870
        %2087 = vmatpush.bf16.msra.mxu0 %v1868
        %2088 = vmatpush.bf16.msra.mxu0 %v1866
        %2089 = vmatpush.bf16.msra.mxu0 %v1864
        %2090 = vmatpush.bf16.msra.mxu0 %v1862
        %2091 = vmatpush.bf16.msra.mxu0 %v1860
        %2092 = vmatmul.bf16.gmra.mxu0 %v1297
        %v2093 = vpop.f32.mrf.mxu0
        %v2094 = vadd.f32 %v1520, %v2093
        %v2095 = vpop.f32.mrf.mxu0
        %2096 = vdwg.mxu0
        %2097 = vmatpush.bf16.msra.mxu0 %v1890
        %2098 = vmatpush.bf16.msra.mxu0 %v1888
        %2099 = vmatpush.bf16.msra.mxu0 %v1886
        %2100 = vmatpush.bf16.msra.mxu0 %v1884
        %2101 = vmatpush.bf16.msra.mxu0 %v1882
        %2102 = vmatpush.bf16.msra.mxu0 %v1880
        %2103 = vmatpush.bf16.msra.mxu0 %v1878
        %2104 = vmatpush.bf16.msra.mxu0 %v1876
        %2105 = vmatmul.bf16.gmra.mxu0 %v1315
        %v2106 = vpop.f32.mrf.mxu0
        %v2107 = vadd.f32 %v2094, %v2106
        %v2108 = vpop.f32.mrf.mxu0
        %2109 = vdwg.mxu0
        %2110 = vmatpush.bf16.msra.mxu0 %v1906
        %2111 = vmatpush.bf16.msra.mxu0 %v1904
        %2112 = vmatpush.bf16.msra.mxu0 %v1902
        %2113 = vmatpush.bf16.msra.mxu0 %v1900
        %2114 = vmatpush.bf16.msra.mxu0 %v1898
        %2115 = vmatpush.bf16.msra.mxu0 %v1896
        %2116 = vmatpush.bf16.msra.mxu0 %v1894
        %2117 = vmatpush.bf16.msra.mxu0 %v1892
        %2118 = vmatmul.bf16.gmra.mxu0 %v1333
        %v2119 = vpop.f32.mrf.mxu0
        %v2120 = vadd.f32 %v2107, %v2119
        %v2121 = vpop.f32.mrf.mxu0
        %2122 = vdwg.mxu0
        %2123 = vmatpush.bf16.msra.mxu0 %v1922
        %2124 = vmatpush.bf16.msra.mxu0 %v1920
        %2125 = vmatpush.bf16.msra.mxu0 %v1918
        %2126 = vmatpush.bf16.msra.mxu0 %v1916
        %2127 = vmatpush.bf16.msra.mxu0 %v1914
        %2128 = vmatpush.bf16.msra.mxu0 %v1912
        %2129 = vmatpush.bf16.msra.mxu0 %v1910
        %2130 = vmatpush.bf16.msra.mxu0 %v1908
        %2131 = vmatmul.bf16.gmra.mxu0 %v1351
        %v2132 = vpop.f32.mrf.mxu0
        %v2133 = vadd.f32 %v2120, %v2132
        %v2134 = vpop.f32.mrf.mxu0
        %2135 = vdwg.mxu0
        %2136 = vmatpush.bf16.msra.mxu0 %v1938
        %2137 = vmatpush.bf16.msra.mxu0 %v1936
        %2138 = vmatpush.bf16.msra.mxu0 %v1934
        %2139 = vmatpush.bf16.msra.mxu0 %v1932
        %2140 = vmatpush.bf16.msra.mxu0 %v1930
        %2141 = vmatpush.bf16.msra.mxu0 %v1928
        %2142 = vmatpush.bf16.msra.mxu0 %v1926
        %2143 = vmatpush.bf16.msra.mxu0 %v1924
        %2144 = vmatmul.bf16.gmra.mxu0 %v1369
        %v2145 = vpop.f32.mrf.mxu0
        %v2146 = vadd.f32 %v2133, %v2145
        %v2147 = vpop.f32.mrf.mxu0
        %2148 = vdwg.mxu0
        %2149 = vmatpush.bf16.msra.mxu0 %v1954
        %2150 = vmatpush.bf16.msra.mxu0 %v1952
        %2151 = vmatpush.bf16.msra.mxu0 %v1950
        %2152 = vmatpush.bf16.msra.mxu0 %v1948
        %2153 = vmatpush.bf16.msra.mxu0 %v1946
        %2154 = vmatpush.bf16.msra.mxu0 %v1944
        %2155 = vmatpush.bf16.msra.mxu0 %v1942
        %2156 = vmatpush.bf16.msra.mxu0 %v1940
        %2157 = vmatmul.bf16.gmra.mxu0 %v1387
        %v2158 = vpop.f32.mrf.mxu0
        %v2159 = vadd.f32 %v2146, %v2158
        %v2160 = vpop.f32.mrf.mxu0
        %2161 = vdwg.mxu0
        %2162 = vmatpush.bf16.msra.mxu0 %v1970
        %2163 = vmatpush.bf16.msra.mxu0 %v1968
        %2164 = vmatpush.bf16.msra.mxu0 %v1966
        %2165 = vmatpush.bf16.msra.mxu0 %v1964
        %2166 = vmatpush.bf16.msra.mxu0 %v1962
        %2167 = vmatpush.bf16.msra.mxu0 %v1960
        %2168 = vmatpush.bf16.msra.mxu0 %v1958
        %2169 = vmatpush.bf16.msra.mxu0 %v1956
        %2170 = vmatmul.bf16.gmra.mxu0 %v1405
        %v2171 = vpop.f32.mrf.mxu0
        %v2172 = vadd.f32 %v2159, %v2171
        %v2173 = vpop.f32.mrf.mxu0
        %2174 = vdwg.mxu0
        %2175 = vmatpush.bf16.msra.mxu0 %v1875
        %2176 = vmatpush.bf16.msra.mxu0 %v1873
        %2177 = vmatpush.bf16.msra.mxu0 %v1871
        %2178 = vmatpush.bf16.msra.mxu0 %v1869
        %2179 = vmatpush.bf16.msra.mxu0 %v1867
        %2180 = vmatpush.bf16.msra.mxu0 %v1865
        %2181 = vmatpush.bf16.msra.mxu0 %v1863
        %2182 = vmatpush.bf16.msra.mxu0 %v1861
        %2183 = vmatmul.bf16.gmra.mxu0 %v1297
        %v2184 = vpop.f32.mrf.mxu0
        %v2185 = vadd.f32 %v1521, %v2184
        %v2186 = vpop.f32.mrf.mxu0
        %2187 = vdwg.mxu0
        %2188 = vmatpush.bf16.msra.mxu0 %v1891
        %2189 = vmatpush.bf16.msra.mxu0 %v1889
        %2190 = vmatpush.bf16.msra.mxu0 %v1887
        %2191 = vmatpush.bf16.msra.mxu0 %v1885
        %2192 = vmatpush.bf16.msra.mxu0 %v1883
        %2193 = vmatpush.bf16.msra.mxu0 %v1881
        %2194 = vmatpush.bf16.msra.mxu0 %v1879
        %2195 = vmatpush.bf16.msra.mxu0 %v1877
        %2196 = vmatmul.bf16.gmra.mxu0 %v1315
        %v2197 = vpop.f32.mrf.mxu0
        %v2198 = vadd.f32 %v2185, %v2197
        %v2199 = vpop.f32.mrf.mxu0
        %2200 = vdwg.mxu0
        %2201 = vmatpush.bf16.msra.mxu0 %v1907
        %2202 = vmatpush.bf16.msra.mxu0 %v1905
        %2203 = vmatpush.bf16.msra.mxu0 %v1903
        %2204 = vmatpush.bf16.msra.mxu0 %v1901
        %2205 = vmatpush.bf16.msra.mxu0 %v1899
        %2206 = vmatpush.bf16.msra.mxu0 %v1897
        %2207 = vmatpush.bf16.msra.mxu0 %v1895
        %2208 = vmatpush.bf16.msra.mxu0 %v1893
        %2209 = vmatmul.bf16.gmra.mxu0 %v1333
        %v2210 = vpop.f32.mrf.mxu0
        %v2211 = vadd.f32 %v2198, %v2210
        %v2212 = vpop.f32.mrf.mxu0
        %2213 = vdwg.mxu0
        %2214 = vmatpush.bf16.msra.mxu0 %v1923
        %2215 = vmatpush.bf16.msra.mxu0 %v1921
        %2216 = vmatpush.bf16.msra.mxu0 %v1919
        %2217 = vmatpush.bf16.msra.mxu0 %v1917
        %2218 = vmatpush.bf16.msra.mxu0 %v1915
        %2219 = vmatpush.bf16.msra.mxu0 %v1913
        %2220 = vmatpush.bf16.msra.mxu0 %v1911
        %2221 = vmatpush.bf16.msra.mxu0 %v1909
        %2222 = vmatmul.bf16.gmra.mxu0 %v1351
        %v2223 = vpop.f32.mrf.mxu0
        %v2224 = vadd.f32 %v2211, %v2223
        %v2225 = vpop.f32.mrf.mxu0
        %2226 = vdwg.mxu0
        %2227 = vmatpush.bf16.msra.mxu0 %v1939
        %2228 = vmatpush.bf16.msra.mxu0 %v1937
        %2229 = vmatpush.bf16.msra.mxu0 %v1935
        %2230 = vmatpush.bf16.msra.mxu0 %v1933
        %2231 = vmatpush.bf16.msra.mxu0 %v1931
        %2232 = vmatpush.bf16.msra.mxu0 %v1929
        %2233 = vmatpush.bf16.msra.mxu0 %v1927
        %2234 = vmatpush.bf16.msra.mxu0 %v1925
        %2235 = vmatmul.bf16.gmra.mxu0 %v1369
        %v2236 = vpop.f32.mrf.mxu0
        %v2237 = vadd.f32 %v2224, %v2236
        %v2238 = vpop.f32.mrf.mxu0
        %2239 = vdwg.mxu0
        %2240 = vmatpush.bf16.msra.mxu0 %v1955
        %2241 = vmatpush.bf16.msra.mxu0 %v1953
        %2242 = vmatpush.bf16.msra.mxu0 %v1951
        %2243 = vmatpush.bf16.msra.mxu0 %v1949
        %2244 = vmatpush.bf16.msra.mxu0 %v1947
        %2245 = vmatpush.bf16.msra.mxu0 %v1945
        %2246 = vmatpush.bf16.msra.mxu0 %v1943
        %2247 = vmatpush.bf16.msra.mxu0 %v1941
        %2248 = vmatmul.bf16.gmra.mxu0 %v1387
        %v2249 = vpop.f32.mrf.mxu0
        %v2250 = vadd.f32 %v2237, %v2249
        %v2251 = vpop.f32.mrf.mxu0
        %2252 = vdwg.mxu0
        %2253 = vmatpush.bf16.msra.mxu0 %v1971
        %2254 = vmatpush.bf16.msra.mxu0 %v1969
        %2255 = vmatpush.bf16.msra.mxu0 %v1967
        %2256 = vmatpush.bf16.msra.mxu0 %v1965
        %2257 = vmatpush.bf16.msra.mxu0 %v1963
        %2258 = vmatpush.bf16.msra.mxu0 %v1961
        %2259 = vmatpush.bf16.msra.mxu0 %v1959
        %2260 = vmatpush.bf16.msra.mxu0 %v1957
        %2261 = vmatmul.bf16.gmra.mxu0 %v1405
        %v2262 = vpop.f32.mrf.mxu0
        %v2263 = vadd.f32 %v2250, %v2262
        %v2264 = vpop.f32.mrf.mxu0
        %2265 = vdwg.mxu0
        %v2266 = vmax.f32 %v2172, 0.0
        %v2267 = vmax.f32 %v2263, 0.0
        %v2268 = vpack.c.bf16 %v2266, %v2266
        %v2269 = vpack.c.bf16 %v2267, %v2267
        %v2270 = vld [vmem:[%s7] sm:$0xf]
        %v2271 = vld [vmem:[%s7 + $0x4] sm:$0xf]
        %v2272 = vld [vmem:[%s7 + $0x8] sm:$0xf]
        %v2273 = vld [vmem:[%s7 + $0xc] sm:$0xf]
        %v2274 = vld [vmem:[%s7 + $0x10] sm:$0xf]
        %v2275 = vld [vmem:[%s7 + $0x14] sm:$0xf]
        %v2276 = vld [vmem:[%s7 + $0x18] sm:$0xf]
        %v2277 = vld [vmem:[%s7 + $0x1c] sm:$0xf]
        %v2278 = vld [vmem:[%s7 + $0x20] sm:$0xf]
        %v2279 = vld [vmem:[%s7 + $0x24] sm:$0xf]
        %v2280 = vld [vmem:[%s7 + $0x28] sm:$0xf]
        %v2281 = vld [vmem:[%s7 + $0x2c] sm:$0xf]
        %v2282 = vld [vmem:[%s7 + $0x30] sm:$0xf]
        %v2283 = vld [vmem:[%s7 + $0x34] sm:$0xf]
        %v2284 = vld [vmem:[%s7 + $0x38] sm:$0xf]
        %v2285 = vld [vmem:[%s7 + $0x3c] sm:$0xf]
        %v2286 = vld [vmem:[%s7 + $0x40] sm:$0xf]
        %v2287 = vld [vmem:[%s7 + $0x44] sm:$0xf]
        %v2288 = vld [vmem:[%s7 + $0x48] sm:$0xf]
        %v2289 = vld [vmem:[%s7 + $0x4c] sm:$0xf]
        %v2290 = vld [vmem:[%s7 + $0x50] sm:$0xf]
        %v2291 = vld [vmem:[%s7 + $0x54] sm:$0xf]
        %v2292 = vld [vmem:[%s7 + $0x58] sm:$0xf]
        %v2293 = vld [vmem:[%s7 + $0x5c] sm:$0xf]
        %v2294 = vld [vmem:[%s7 + $0x60] sm:$0xf]
        %v2295 = vld [vmem:[%s7 + $0x64] sm:$0xf]
        %v2296 = vld [vmem:[%s7 + $0x68] sm:$0xf]
        %v2297 = vld [vmem:[%s7 + $0x6c] sm:$0xf]
        %v2298 = vld [vmem:[%s7 + $0x70] sm:$0xf]
        %v2299 = vld [vmem:[%s7 + $0x74] sm:$0xf]
        %v2300 = vld [vmem:[%s7 + $0x78] sm:$0xf]
        %v2301 = vld [vmem:[%s7 + $0x7c] sm:$0xf]
        %v2302 = vld [vmem:[%s8] sm:$0x1]
        %v2304 = vperm.slane %v2302, 0
        %v2338 = vunpack.c.l.b16 %v2270
        %v2339 = vunpack.c.l.b16 %v2271
        %v2340 = vunpack.c.l.b16 %v2272
        %v2341 = vunpack.c.l.b16 %v2273
        %v2342 = vunpack.c.l.b16 %v2274
        %v2343 = vunpack.c.l.b16 %v2275
        %v2344 = vunpack.c.l.b16 %v2276
        %v2345 = vunpack.c.l.b16 %v2277
        %v2346 = vunpack.c.l.b16 %v2278
        %v2347 = vunpack.c.l.b16 %v2279
        %v2348 = vunpack.c.l.b16 %v2280
        %v2349 = vunpack.c.l.b16 %v2281
        %v2350 = vunpack.c.l.b16 %v2282
        %v2351 = vunpack.c.l.b16 %v2283
        %v2352 = vunpack.c.l.b16 %v2284
        %v2353 = vunpack.c.l.b16 %v2285
        %v2354 = vunpack.c.l.b16 %v2286
        %v2355 = vunpack.c.l.b16 %v2287
        %v2356 = vunpack.c.l.b16 %v2288
        %v2357 = vunpack.c.l.b16 %v2289
        %v2358 = vunpack.c.l.b16 %v2290
        %v2359 = vunpack.c.l.b16 %v2291
        %v2360 = vunpack.c.l.b16 %v2292
        %v2361 = vunpack.c.l.b16 %v2293
        %v2362 = vunpack.c.l.b16 %v2294
        %v2363 = vunpack.c.l.b16 %v2295
        %v2364 = vunpack.c.l.b16 %v2296
        %v2365 = vunpack.c.l.b16 %v2297
        %v2366 = vunpack.c.l.b16 %v2298
        %v2367 = vunpack.c.l.b16 %v2299
        %v2368 = vunpack.c.l.b16 %v2300
        %v2369 = vunpack.c.l.b16 %v2301
        %v2370 = vpack.c.b16 %v2339, %v2338
        %v2371 = vpack.c.b16 %v2341, %v2340
        %v2372 = vpack.c.b16 %v2343, %v2342
        %v2373 = vpack.c.b16 %v2345, %v2344
        %v2374 = vpack.c.b16 %v2347, %v2346
        %v2375 = vpack.c.b16 %v2349, %v2348
        %v2376 = vpack.c.b16 %v2351, %v2350
        %v2377 = vpack.c.b16 %v2353, %v2352
        %v2378 = vpack.c.b16 %v2355, %v2354
        %v2379 = vpack.c.b16 %v2357, %v2356
        %v2380 = vpack.c.b16 %v2359, %v2358
        %v2381 = vpack.c.b16 %v2361, %v2360
        %v2382 = vpack.c.b16 %v2363, %v2362
        %v2383 = vpack.c.b16 %v2365, %v2364
        %v2384 = vpack.c.b16 %v2367, %v2366
        %v2385 = vpack.c.b16 %v2369, %v2368
        %2402 = vmatpush.bf16.msra.mxu0 %v2377
        %2403 = vmatpush.bf16.msra.mxu0 %v2376
        %2404 = vmatpush.bf16.msra.mxu0 %v2375
        %2405 = vmatpush.bf16.msra.mxu0 %v2374
        %2406 = vmatpush.bf16.msra.mxu0 %v2373
        %2407 = vmatpush.bf16.msra.mxu0 %v2372
        %2408 = vmatpush.bf16.msra.mxu0 %v2371
        %2409 = vmatpush.bf16.msra.mxu0 %v2370
        %2410 = vmatmul.bf16.gmra.mxu0 %v2268
        %v2411 = vpop.f32.mrf.mxu0
        %v2412 = vadd.f32 %v2304, %v2411
        %v2413 = vpop.f32.mrf.mxu0
        %2414 = vdwg.mxu0
        %2415 = vmatpush.bf16.msra.mxu0 %v2385
        %2416 = vmatpush.bf16.msra.mxu0 %v2384
        %2417 = vmatpush.bf16.msra.mxu0 %v2383
        %2418 = vmatpush.bf16.msra.mxu0 %v2382
        %2419 = vmatpush.bf16.msra.mxu0 %v2381
        %2420 = vmatpush.bf16.msra.mxu0 %v2380
        %2421 = vmatpush.bf16.msra.mxu0 %v2379
        %2422 = vmatpush.bf16.msra.mxu0 %v2378
        %2423 = vmatmul.bf16.gmra.mxu0 %v2269
        %v2424 = vpop.f32.mrf.mxu0
        %v2425 = vadd.f32 %v2412, %v2424
        %v2426 = vpop.f32.mrf.mxu0
        %2427 = vdwg.mxu0
        %2428 = vmax.xlane.f32.xlu0 %v2425
        %v2429 = vpop.xlane.xlu0 %2428
        %v2430 = vsub.f32 %v2425, %v2429
        %v2431 = vmul.f32 %v2430, 1.442695
        %v2432 = vpow.pop %v2431
        %2433 = vadd.xlane.f32.xlu0 %v2432
        %v2434 = vpop.xlane.xlu0 %2433
        %v2435 = vlog2.pop %v2434
        %v2436 = vmul.f32 %v2435, 0.6931472
        %v2437 = vsub.f32 %v2430, %v2436
        %2438 = vst [vmem:[%s343] sm:$0xff] %v2437
        %s2439 = sand.u32 %s226, 1
        %s2440 = scalar_lea.sflag [#allocation6], %s2439
        %s2441 = sand.u32 %s226, 1
        %s2442 = smul.addr %s2441, 8
        %s2443 = scalar_lea.vmem [#allocation7], %s2442
        // Predicated region
        $region61: #{tpu_custom_call.1} parent=55 // pred_check
          %p2444 = pneg %p236
        $region62: #{tpu_custom_call.1} parent=55 // pred_check_branch
          %2446 = sbr.rel (%p2444) target = $region64
        $region63: #{tpu_custom_call.1} parent=55 // pred_region
          %2448 = vsyncadd %s2440, 0
          %s2449 = smul.addr %s24, 8
          %s2450 = scalar_lea.hbm %s9, %s2449
          %s2452 = sshll.u32 %s2443, 4
          %s2453 = int_to_ptr.vmem [resolvable:$true] %s2452
          %s2454 = sshll.u32 %s2450, 4
          %s2455 = int_to_ptr.hbm [resolvable:$true] %s2454
          %2457 = dma.vmem_to_hbm [thread:$0]  %s2453, 128, %s2455, %s2440
        $region64: #{tpu_custom_call.1} parent=55 // pred_fallthru
          _
      $region56: #{tpu_custom_call.1} parent=5 // pred_fallthru
        _
      %p2458 = scmp.le.s32.totalorder 2, %s19
      // Predicated region
      $region65: #{tpu_custom_call.1} parent=5 // pred_check
        %p2459 = pneg %p2458
      $region66: #{tpu_custom_call.1} parent=5 // pred_check_branch
        %2461 = sbr.rel (%p2459) target = $region68
      $region67: #{tpu_custom_call.1} parent=5 // pred_region
        %s2462 = ssub.s32 %s19, 2
        // Predicated region
        $region69: #{tpu_custom_call.1} parent=67 // pred_check
          %p2463 = pneg %p242
        $region70: #{tpu_custom_call.1} parent=67 // pred_check_branch
          %2465 = sbr.rel (%p2463) target = $region72
        $region71: #{tpu_custom_call.1} parent=67 // pred_region
          %s2466 = sand.u32 %s227, 1
          %s2467 = scalar_lea.sflag [#allocation6], %s2466
          %s2468 = sand.u32 %s227, 1
          %s2469 = smul.addr %s2468, 8
          %s2470 = scalar_lea.vmem [#allocation7], %s2469
          %2472 = dma.done %s2467, 128
        $region72: #{tpu_custom_call.1} parent=67 // pred_fallthru
          _
      $region68: #{tpu_custom_call.1} parent=5 // pred_fallthru
        _
    $region6: #{tpu_custom_call.1} parent=1 // loop_footer
      %s23 = sadd.s32 1, %s19
    $region7: #{tpu_custom_call.1} parent=1 // loop_footer_branch
      %18 = sbr.rel target = $region3
    $region8: #{tpu_custom_call.1} parent=1 // loop_exit
      _
    %2473 = vsyncpa [#allocation5], 1
    %s2474 = scalar_lea.sflag [#allocation5], 1
    %2475 = vsyncpa %s2474, 1
    %2476 = vsyncpa [#allocation6], 1
    %s2477 = scalar_lea.sflag [#allocation6], 1
    %2478 = vsyncpa %s2477, 1

</llo_original>
